<compile_context>
chip_gen: v7x
topology: tpu7x:2x2x1
jax: 0.10.0
libtpu: 0.0.40
codegen_flags: <defaults>
</compile_context>

<pallas_src>
import functools

import jax
import jax.numpy as jnp
from jax.experimental import pallas as pl
from jax.experimental.pallas import tpu as pltpu

Z_DIM = 8              # args.z_dim
H1 = 200               # lin1 out (logical)
H2 = 600               # lin2 out (logical)
FEATURE_SHAPE = 256    # args.feature_shape

# Lane-aligned (128-multiple) padded hidden widths -> unmasked vregs/MXU tiles.
H1_PAD = 256
H2_PAD = 640

DEFAULT_BATCH_TILE = 1024   # max rows of x per grid step (tunable)
ROW_ALIGN = 16              # covers bf16 (16-row sublane pack) and f32 (8-row)


def _round_up(v, m):
    return (v + m - 1) // m * m


def _cdiv(a, b):
    return (a + b - 1) // b


def _softplus(x):
    # Numerically stable softplus, computed in x.dtype (f32 or bf16).
    return jnp.maximum(x, 0.0) + jnp.log1p(jnp.exp(-jnp.abs(x)))


@functools.lru_cache(maxsize=None)
def _default_elem_dtype():
    # bf16 VPU/EUP exist on v6e/v7x -> bf16 elementwise halves softplus cost.
    # v5e (and older) have no bf16 VPU/EUP -> keep elementwise math in f32.
    try:
        kind = jax.devices()[0].device_kind.lower()
    except Exception:
        kind = ""
    if ("v6" in kind) or ("v7" in kind) or ("7x" in kind):
        return jnp.dtype(jnp.bfloat16)
    return jnp.dtype(jnp.float32)


def decoder_rec_kernel(x_ref, w1_ref, b1_ref, w2_ref, b2_ref, w3_ref, b3_ref,
                       out_ref, *, elem_dtype):
    """Fused 3-layer MLP. bf16 MXU operands, f32 accumulation,
    elementwise (bias+softplus) in `elem_dtype` (f32 on v5e, bf16 on v6e/v7x)."""
    f32 = jnp.float32
    bf16 = jnp.bfloat16

    # Layer 1: (TB, 8) @ (8, 256)
    h = jnp.dot(x_ref[...], w1_ref[...], preferred_element_type=f32)
    h = _softplus(h.astype(elem_dtype) + b1_ref[...].astype(elem_dtype))

    # Layer 2: (TB, 256) @ (256, 640)
    h = jnp.dot(h.astype(bf16), w2_ref[...], preferred_element_type=f32)
    h = _softplus(h.astype(elem_dtype) + b2_ref[...].astype(elem_dtype))

    # Layer 3: (TB, 640) @ (640, 256); final bias add in f32.
    logits = jnp.dot(h.astype(bf16), w3_ref[...], preferred_element_type=f32)
    out_ref[...] = (logits + b3_ref[...]).astype(out_ref.dtype)


@functools.partial(jax.jit, static_argnames=("batch_tile", "elem_dtype"))
def _decoder_rec_forward(x, w1, b1, w2, b2, w3, b3, *, batch_tile, elem_dtype):
    B = x.shape[0]

    # Batch tiling: choose the number of grid steps first, then the smallest
    # 16-row-aligned tile that covers B.  -> minimal padding, large tiles
    # (amortizes ~0.35us/step overhead, keeps MXU rows full, big unmasked
    # 256-lane output stores).  No tile halving: v5e/v6e are single-TC, so a
    # longer sequential grid is pure overhead.
    n_steps = max(1, _cdiv(B, batch_tile))
    tb = _round_up(_cdiv(B, n_steps), ROW_ALIGN)
    B_pad = tb * n_steps

    x_p = x.astype(jnp.bfloat16)                    # MXU operand dtype
    if B_pad != B:
        x_p = jnp.pad(x_p, ((0, B_pad - B), (0, 0)))

    kernel = functools.partial(decoder_rec_kernel, elem_dtype=elem_dtype)

    out = pl.pallas_call(
        kernel,
        out_shape=jax.ShapeDtypeStruct((B_pad, FEATURE_SHAPE), jnp.float32),
        grid_spec=pltpu.PrefetchScalarGridSpec(
            num_scalar_prefetch=0,
            grid=(n_steps,),
            in_specs=[
                pl.BlockSpec((tb, Z_DIM), lambda i: (i, 0)),
                # Constant index_maps -> weights/biases DMA'd once, resident.
                pl.BlockSpec((Z_DIM, H1_PAD), lambda i: (0, 0)),
                pl.BlockSpec((1, H1_PAD), lambda i: (0, 0)),
                pl.BlockSpec((H1_PAD, H2_PAD), lambda i: (0, 0)),
                pl.BlockSpec((1, H2_PAD), lambda i: (0, 0)),
                pl.BlockSpec((H2_PAD, FEATURE_SHAPE), lambda i: (0, 0)),
                pl.BlockSpec((1, FEATURE_SHAPE), lambda i: (0, 0)),
            ],
            out_specs=pl.BlockSpec((tb, FEATURE_SHAPE), lambda i: (i, 0)),
        ),
        # TODO(synk): on v7x (2 TCs) switch the batch axis to
        # pltpu.CORE_PARALLEL (plain "parallel" vs "arbitrary" does not change
        # codegen) and keep >= 256 rows per core.
        compiler_params=pltpu.CompilerParams(
            dimension_semantics=("parallel",)),
    )(x_p, w1, b1, w2, b2, w3, b3)

    return out if B_pad == B else out[:B]


def decoder_rec_forward(x, w1, b1, w2, b2, w3, b3, *,
                        batch_tile=DEFAULT_BATCH_TILE, elem_dtype=None):
    """x: [B, Z_DIM] f32 -> bernoulli_logits: [B, FEATURE_SHAPE] f32."""
    if elem_dtype is None:
        elem_dtype = _default_elem_dtype()
    return _decoder_rec_forward(x, w1, b1, w2, b2, w3, b3,
                                batch_tile=batch_tile,
                                elem_dtype=jnp.dtype(elem_dtype))


def init_params(key):
    """Deterministic init mirroring nn.Linear defaults (U(+-1/sqrt(fan_in))).

    Weights are returned pre-transposed to [in, out], zero-padded to the
    lane-aligned hidden widths and cast to bf16 (MXU operand dtype); biases are
    f32, zero-padded, shape [1, out].  Zero padding is numerically inert: the
    padded lanes of each layer's activation (softplus(0)=log 2) only ever
    multiply zero-padded rows of the next layer's weight."""
    ks = jax.random.split(key, 6)

    def linear(kw, kb, fan_in, fan_out, in_pad, out_pad):
        bound = 1.0 / jnp.sqrt(fan_in)
        w = jax.random.uniform(kw, (fan_in, fan_out), jnp.float32, -bound, bound)
        b = jax.random.uniform(kb, (1, fan_out), jnp.float32, -bound, bound)
        w = jnp.pad(w, ((0, in_pad - fan_in), (0, out_pad - fan_out)))
        b = jnp.pad(b, ((0, 0), (0, out_pad - fan_out)))
        return w.astype(jnp.bfloat16), b

    w1, b1 = linear(ks[0], ks[1], Z_DIM, H1, Z_DIM, H1_PAD)
    w2, b2 = linear(ks[2], ks[3], H1, H2, H1_PAD, H2_PAD)
    w3, b3 = linear(ks[4], ks[5], H2, FEATURE_SHAPE, H2_PAD, FEATURE_SHAPE)
    return w1, b1, w2, b2, w3, b3


def reference_forward_matched(x, w1, b1, w2, b2, w3, b3, elem_dtype):
    # Same bf16-operand / f32-accumulate / elem_dtype-elementwise math as the
    # kernel (tight check).
    f32 = jnp.float32
    bf16 = jnp.bfloat16
    h = jnp.dot(x.astype(bf16), w1, preferred_element_type=f32)
    h = _softplus(h.astype(elem_dtype) + b1.astype(elem_dtype))
    h = jnp.dot(h.astype(bf16), w2, preferred_element_type=f32)
    h = _softplus(h.astype(elem_dtype) + b2.astype(elem_dtype))
    return jnp.dot(h.astype(bf16), w3, preferred_element_type=f32) + b3


def reference_forward_f32(x, w1, b1, w2, b2, w3, b3):
    # Full-f32 reference of the original module semantics (loose check).
    h = jax.nn.softplus(x @ w1.astype(jnp.float32) + b1)
    h = jax.nn.softplus(h @ w2.astype(jnp.float32) + b2)
    return h @ w3.astype(jnp.float32) + b3


if __name__ == "__main__":
    key = jax.random.PRNGKey(0)
    k_param, k_x1, k_x2 = jax.random.split(key, 3)
    params = init_params(k_param)
    elem_dtype = _default_elem_dtype()

    # Small batch (single grid step + padding/slice path).
    B = 2
    x = jax.random.normal(k_x1, (B, Z_DIM), jnp.float32)
    out = jax.block_until_ready(decoder_rec_forward(x, *params))
    assert out.shape == (B, FEATURE_SHAPE), out.shape

    ref_matched = reference_forward_matched(x, *params, elem_dtype)
    assert jnp.allclose(out, ref_matched, atol=2e-2, rtol=2e-2), \
        "mismatch vs matched-precision reference"
    ref_f32 = reference_forward_f32(x, *params)
    assert jnp.allclose(out, ref_f32, atol=5e-2, rtol=5e-2), \
        "mismatch vs f32 reference"

    # Multi-step grid (exercises the tile-fitting + >1 grid-step path).
    B2 = 200
    x2 = jax.random.normal(k_x2, (B2, Z_DIM), jnp.float32)
    out2 = jax.block_until_ready(
        decoder_rec_forward(x2, *params, batch_tile=64))
    assert out2.shape == (B2, FEATURE_SHAPE), out2.shape
    ref2 = reference_forward_f32(x2, *params)
    assert jnp.allclose(out2, ref2, atol=5e-2, rtol=5e-2), \
        "mismatch vs f32 reference (multi-step grid)"

    print("KERNEL_OK")
</pallas_src>

<mosaic_0001>
module attributes {stable_mosaic.version = 11 : i64} {
  func.func @decoder_rec_kernel(%arg0: i32, %arg1: memref<16x8xbf16, #tpu.memory_space<vmem>>, %arg2: memref<8x256xbf16, #tpu.memory_space<vmem>>, %arg3: memref<1x256xf32, #tpu.memory_space<vmem>>, %arg4: memref<256x640xbf16, #tpu.memory_space<vmem>>, %arg5: memref<1x640xf32, #tpu.memory_space<vmem>>, %arg6: memref<640x256xbf16, #tpu.memory_space<vmem>>, %arg7: memref<1x256xf32, #tpu.memory_space<vmem>>, %arg8: memref<16x256xf32, #tpu.memory_space<vmem>>) attributes {dimension_semantics = [#tpu.dimension_semantics<parallel>], iteration_bounds = array<i64: 1>, scalar_prefetch = 0 : i64, scratch_operands = 0 : i64, tpu.core_type = #tpu.core_type<tc>, window_params = [{transform_indices = @transform_0, window_bounds = array<i64: 16, 8>}, {pipeline_mode = #tpu.pipeline_mode<synchronous>, transform_indices = @transform_1, window_bounds = array<i64: 8, 256>}, {pipeline_mode = #tpu.pipeline_mode<synchronous>, transform_indices = @transform_2, window_bounds = array<i64: 1, 256>}, {pipeline_mode = #tpu.pipeline_mode<synchronous>, transform_indices = @transform_3, window_bounds = array<i64: 256, 640>}, {pipeline_mode = #tpu.pipeline_mode<synchronous>, transform_indices = @transform_4, window_bounds = array<i64: 1, 640>}, {pipeline_mode = #tpu.pipeline_mode<synchronous>, transform_indices = @transform_5, window_bounds = array<i64: 640, 256>}, {pipeline_mode = #tpu.pipeline_mode<synchronous>, transform_indices = @transform_6, window_bounds = array<i64: 1, 256>}, {transform_indices = @transform_7, window_bounds = array<i64: 16, 256>}]} {
    %c0 = arith.constant 0 : index
    %c0_0 = arith.constant 0 : index
    %0 = vector.load %arg1[%c0, %c0_0] : memref<16x8xbf16, #tpu.memory_space<vmem>>, vector<16x8xbf16>
    %c0_1 = arith.constant 0 : index
    %c0_2 = arith.constant 0 : index
    %1 = vector.load %arg2[%c0_1, %c0_2] : memref<8x256xbf16, #tpu.memory_space<vmem>>, vector<8x256xbf16>
    %cst = arith.constant dense<0.000000e+00> : vector<16x256xf32>
    %2 = tpu.matmul %0, %1, %cst {dimension_numbers = #tpu.dot_dimension_numbers<[1], [0], [0], [1], [0, 0, 1, 1], [], []>} : vector<16x8xbf16>, vector<8x256xbf16>, vector<16x256xf32> -> vector<16x256xf32>
    %c0_3 = arith.constant 0 : index
    %c0_4 = arith.constant 0 : index
    %3 = vector.load %arg3[%c0_3, %c0_4] : memref<1x256xf32, #tpu.memory_space<vmem>>, vector<1x256xf32>
    %4 = vector.broadcast %3 : vector<1x256xf32> to vector<16x256xf32>
    %5 = arith.addf %2, %4 : vector<16x256xf32>
    %cst_5 = arith.constant 0.000000e+00 : f32
    %6 = vector.broadcast %cst_5 : f32 to vector<16x256xf32>
    %7 = arith.maximumf %5, %6 : vector<16x256xf32>
    %8 = math.absf %5 : vector<16x256xf32>
    %cst_6 = arith.constant 0.000000e+00 : f32
    %9 = vector.broadcast %cst_6 : f32 to vector<16x256xf32>
    %10 = arith.subf %9, %8 : vector<16x256xf32>
    %11 = math.exp %10 : vector<16x256xf32>
    %12 = math.log1p %11 : vector<16x256xf32>
    %13 = arith.addf %7, %12 : vector<16x256xf32>
    %14 = arith.truncf %13 : vector<16x256xf32> to vector<16x256xbf16>
    %c0_7 = arith.constant 0 : index
    %c0_8 = arith.constant 0 : index
    %15 = vector.load %arg4[%c0_7, %c0_8] : memref<256x640xbf16, #tpu.memory_space<vmem>>, vector<256x640xbf16>
    %cst_9 = arith.constant dense<0.000000e+00> : vector<16x640xf32>
    %16 = tpu.matmul %14, %15, %cst_9 {dimension_numbers = #tpu.dot_dimension_numbers<[1], [0], [0], [1], [0, 0, 1, 1], [], []>} : vector<16x256xbf16>, vector<256x640xbf16>, vector<16x640xf32> -> vector<16x640xf32>
    %c0_10 = arith.constant 0 : index
    %c0_11 = arith.constant 0 : index
    %17 = vector.load %arg5[%c0_10, %c0_11] : memref<1x640xf32, #tpu.memory_space<vmem>>, vector<1x640xf32>
    %18 = vector.broadcast %17 : vector<1x640xf32> to vector<16x640xf32>
    %19 = arith.addf %16, %18 : vector<16x640xf32>
    %cst_12 = arith.constant 0.000000e+00 : f32
    %20 = vector.broadcast %cst_12 : f32 to vector<16x640xf32>
    %21 = arith.maximumf %19, %20 : vector<16x640xf32>
    %22 = math.absf %19 : vector<16x640xf32>
    %cst_13 = arith.constant 0.000000e+00 : f32
    %23 = vector.broadcast %cst_13 : f32 to vector<16x640xf32>
    %24 = arith.subf %23, %22 : vector<16x640xf32>
    %25 = math.exp %24 : vector<16x640xf32>
    %26 = math.log1p %25 : vector<16x640xf32>
    %27 = arith.addf %21, %26 : vector<16x640xf32>
    %28 = arith.truncf %27 : vector<16x640xf32> to vector<16x640xbf16>
    %c0_14 = arith.constant 0 : index
    %c0_15 = arith.constant 0 : index
    %29 = vector.load %arg6[%c0_14, %c0_15] : memref<640x256xbf16, #tpu.memory_space<vmem>>, vector<640x256xbf16>
    %cst_16 = arith.constant dense<0.000000e+00> : vector<16x256xf32>
    %30 = tpu.matmul %28, %29, %cst_16 {dimension_numbers = #tpu.dot_dimension_numbers<[1], [0], [0], [1], [0, 0, 1, 1], [], []>} : vector<16x640xbf16>, vector<640x256xbf16>, vector<16x256xf32> -> vector<16x256xf32>
    %c0_17 = arith.constant 0 : index
    %c0_18 = arith.constant 0 : index
    %31 = vector.load %arg7[%c0_17, %c0_18] : memref<1x256xf32, #tpu.memory_space<vmem>>, vector<1x256xf32>
    %32 = vector.broadcast %31 : vector<1x256xf32> to vector<16x256xf32>
    %33 = arith.addf %30, %32 : vector<16x256xf32>
    %c0_19 = arith.constant 0 : index
    %c0_20 = arith.constant 0 : index
    %34 = vector.load %arg8[%c0_19, %c0_20] : memref<16x256xf32, #tpu.memory_space<vmem>>, vector<16x256xf32>
    tpu.vector_store %arg8[%c0_19, %c0_20], %33 {strides = array<i32>} : memref<16x256xf32, #tpu.memory_space<vmem>>, vector<16x256xf32>,
    return
  }
  func.func @transform_0(%arg0: i32) -> (i32, i32) {
    %c0_i32 = arith.constant 0 : i32
    %c0_i32_0 = arith.constant 0 : i32
    return %arg0, %c0_i32 : i32, i32
  }
  func.func @transform_1(%arg0: i32) -> (i32, i32) {
    %c0_i32 = arith.constant 0 : i32
    %c0_i32_0 = arith.constant 0 : i32
    %c0_i32_1 = arith.constant 0 : i32
    return %c0_i32, %c0_i32_0 : i32, i32
  }
  func.func @transform_2(%arg0: i32) -> (i32, i32) {
    %c0_i32 = arith.constant 0 : i32
    %c0_i32_0 = arith.constant 0 : i32
    %c0_i32_1 = arith.constant 0 : i32
    return %c0_i32, %c0_i32_0 : i32, i32
  }
  func.func @transform_3(%arg0: i32) -> (i32, i32) {
    %c0_i32 = arith.constant 0 : i32
    %c0_i32_0 = arith.constant 0 : i32
    %c0_i32_1 = arith.constant 0 : i32
    return %c0_i32, %c0_i32_0 : i32, i32
  }
  func.func @transform_4(%arg0: i32) -> (i32, i32) {
    %c0_i32 = arith.constant 0 : i32
    %c0_i32_0 = arith.constant 0 : i32
    %c0_i32_1 = arith.constant 0 : i32
    return %c0_i32, %c0_i32_0 : i32, i32
  }
  func.func @transform_5(%arg0: i32) -> (i32, i32) {
    %c0_i32 = arith.constant 0 : i32
    %c0_i32_0 = arith.constant 0 : i32
    %c0_i32_1 = arith.constant 0 : i32
    return %c0_i32, %c0_i32_0 : i32, i32
  }
  func.func @transform_6(%arg0: i32) -> (i32, i32) {
    %c0_i32 = arith.constant 0 : i32
    %c0_i32_0 = arith.constant 0 : i32
    %c0_i32_1 = arith.constant 0 : i32
    return %c0_i32, %c0_i32_0 : i32, i32
  }
  func.func @transform_7(%arg0: i32) -> (i32, i32) {
    %c0_i32 = arith.constant 0 : i32
    %c0_i32_0 = arith.constant 0 : i32
    return %arg0, %c0_i32 : i32, i32
  }
}

</mosaic_0001>

<llo_original>
// kernel: _decoder_rec_forward.1
$region0: #{_decoder_rec_forward.1}
  #allocation0 [shape = 'u32[]', space=smem, size = 0x4, offset = 0x4, fixed_abs, tag = 'smem constant byte address 0x4 - core index']
  #allocation1 [shape = 'u32[144,128]{1,0:T(1,128)}', space=vmem, size = 0x12000, scoped, tag = 'internal scratch']
  %s0 = inlined_call_operand.vmem [shape: bf16[16,8], index: 0, kind: input, shape index: {}]
  %s1 = inlined_call_operand.vmem [shape: bf16[8,256], index: 1, kind: input, shape index: {}]
  %s2 = inlined_call_operand.vmem [shape: f32[1,256], index: 2, kind: input, shape index: {}]
  %s3 = inlined_call_operand.hbm [shape: bf16[256,640], index: 3, kind: input, shape index: {}]
  %s4 = inlined_call_operand.vmem [shape: f32[1,640], index: 4, kind: input, shape index: {}]
  %s5 = inlined_call_operand.hbm [shape: bf16[640,256], index: 5, kind: input, shape index: {}]
  %s6 = inlined_call_operand.vmem [shape: f32[1,256], index: 6, kind: input, shape index: {}]
  %s7 = inlined_call_operand.vmem [shape: f32[16,256], index: 7, kind: output, shape index: {}]
  %s8 = sld [smem:[#allocation0]]
  $region46: #{_decoder_rec_forward.1} parent=0
    _
  %s10 = ssub.s32 1, %s8
  %s11 = scalar_select 0, %s10, %s8
  $region1: #{_decoder_rec_forward.1} parent=0
    #allocation2 [shape = 'u8[327680]{0}', space=vmem, size = 0x50000, scoped, tag = 'input window, operand 3, single buffered']
    #allocation3 [shape = 's32[1]{0}', space=sflag, size = 0x4, scoped, tag = 'scoped memory for _decoder_rec_forward.1']
    #allocation4 [shape = 'u8[327680]{0}', space=vmem, size = 0x50000, scoped, tag = 'input window, operand 5, single buffered']
    #allocation5 [shape = 's32[1]{0}', space=sflag, size = 0x4, scoped, tag = 'scoped memory for _decoder_rec_forward.1']
    %12 = vsyncpa [#allocation3], 0
    %13 = vsyncpa [#allocation5], 0
    // Predicated region
    $region2: #{_decoder_rec_forward.1} parent=1 // pred_check
      _
    $region3: #{_decoder_rec_forward.1} parent=1 // pred_check_branch
      %15 = sbr.rel (0) target = $region5
    $region4: #{_decoder_rec_forward.1} parent=1 // pred_region
      _
    $region5: #{_decoder_rec_forward.1} parent=1 // pred_fallthru
      _
    // Predicated region
    $region6: #{_decoder_rec_forward.1} parent=1 // pred_check
      _
    $region7: #{_decoder_rec_forward.1} parent=1 // pred_check_branch
      %17 = sbr.rel (0) target = $region9
    $region8: #{_decoder_rec_forward.1} parent=1 // pred_region
      _
    $region9: #{_decoder_rec_forward.1} parent=1 // pred_fallthru
      _
    // Predicated region
    $region10: #{_decoder_rec_forward.1} parent=1 // pred_check
      _
    $region11: #{_decoder_rec_forward.1} parent=1 // pred_check_branch
      %19 = sbr.rel (0) target = $region13
    $region12: #{_decoder_rec_forward.1} parent=1 // pred_region
      _
    $region13: #{_decoder_rec_forward.1} parent=1 // pred_fallthru
      _
    // Predicated region
    $region14: #{_decoder_rec_forward.1} parent=1 // pred_check
      _
    $region15: #{_decoder_rec_forward.1} parent=1 // pred_check_branch
      %21 = sbr.rel (0) target = $region17
    $region16: #{_decoder_rec_forward.1} parent=1 // pred_region
      %s23 = ssub.s32 10240, 10240
      %24 = vsyncadd [#allocation3], %s23
      %s25 = sshll.u32 [#allocation2], 4
      %s26 = int_to_ptr.vmem [resolvable:$true] %s25
      %31 = dma.hbm_to_vmem [thread:$0]  %s3, 10240, %s26, [#allocation3], 320, 320, 20
    $region17: #{_decoder_rec_forward.1} parent=1 // pred_fallthru
      _
    // Predicated region
    $region18: #{_decoder_rec_forward.1} parent=1 // pred_check
      _
    $region19: #{_decoder_rec_forward.1} parent=1 // pred_check_branch
      %33 = sbr.rel (0) target = $region21
    $region20: #{_decoder_rec_forward.1} parent=1 // pred_region
      _
    $region21: #{_decoder_rec_forward.1} parent=1 // pred_fallthru
      _
    // Predicated region
    $region22: #{_decoder_rec_forward.1} parent=1 // pred_check
      _
    $region23: #{_decoder_rec_forward.1} parent=1 // pred_check_branch
      %35 = sbr.rel (0) target = $region25
    $region24: #{_decoder_rec_forward.1} parent=1 // pred_region
      %s37 = ssub.s32 10240, 10240
      %38 = vsyncadd [#allocation5], %s37
      %s39 = sshll.u32 [#allocation4], 4
      %s40 = int_to_ptr.vmem [resolvable:$true] %s39
      %45 = dma.hbm_to_vmem [thread:$0]  %s5, 10240, %s40, [#allocation5], 128, 128, 8
    $region25: #{_decoder_rec_forward.1} parent=1 // pred_fallthru
      _
    // Predicated region
    $region26: #{_decoder_rec_forward.1} parent=1 // pred_check
      _
    $region27: #{_decoder_rec_forward.1} parent=1 // pred_check_branch
      %47 = sbr.rel (0) target = $region29
    $region28: #{_decoder_rec_forward.1} parent=1 // pred_region
      _
    $region29: #{_decoder_rec_forward.1} parent=1 // pred_fallthru
      _
    // Predicated region
    $region30: #{_decoder_rec_forward.1} parent=1 // pred_check
      _
    $region31: #{_decoder_rec_forward.1} parent=1 // pred_check_branch
      %49 = sbr.rel (0) target = $region33
    $region32: #{_decoder_rec_forward.1} parent=1 // pred_region
      %50 = dma.done [#allocation3], 10240
    $region33: #{_decoder_rec_forward.1} parent=1 // pred_fallthru
      _
    // Predicated region
    $region34: #{_decoder_rec_forward.1} parent=1 // pred_check
      _
    $region35: #{_decoder_rec_forward.1} parent=1 // pred_check_branch
      %52 = sbr.rel (0) target = $region37
    $region36: #{_decoder_rec_forward.1} parent=1 // pred_region
      %53 = dma.done [#allocation5], 10240
    $region37: #{_decoder_rec_forward.1} parent=1 // pred_fallthru
      _
    %v55 = vld [vmem:[%s0] sm:$0xf]
    %v56 = vld [vmem:[%s0 + $0x4] sm:$0xf]
    %v57 = vld [vmem:[%s1] sm:$0xff]
    %v58 = vld [vmem:[%s2] sm:$0x3]
    %v60 = vlaneseq
    %v61 = vshrl.u32 %v60, 7
    %v62 = vsub.s32 0, %v61
    %v63 = vrot.slane %v58, %v62
    %v64 = vlaneseq
    %v65 = vshrl.u32 %v64, 7
    %v66 = vsub.s32 1, %v65
    %v67 = vrot.slane %v58, %v66
    %v72 = vunpack.c.l.b16 %v55
    %v73 = vunpack.c.l.b16 %v56
    %v74 = vpack.c.b16 %v73, %v72
    %v76 = vunpack.c.l.b16 %v57
    %v77 = vunpack.c.h.b16 %v57
    %v78 = vpack.c.b16 %v76, %v76
    %v79 = vpack.c.b16 %v77, %v77
    %vm80 = vcmask 64512
    %v82 = vsel %vm80, %v74, 0
    %vm84 = vcmask 1043456
    %v86 = vsel %vm84, %v78, 0
    %v89 = vsel %vm84, %v79, 0
    %91 = vmatprep.subr.bf16.mxu0 %v89
    %92 = vmatpush1.bf16.msra.mxu0 %v86
    %93 = vmatprep.subr.bf16.mxu0 0
    %94 = vmatpush1.bf16.msra.mxu0 0
    %95 = vmatprep.subr.bf16.mxu0 0
    %96 = vmatpush1.bf16.msra.mxu0 0
    %97 = vmatprep.subr.bf16.mxu0 0
    %98 = vmatpush1.bf16.msra.mxu0 0
    %99 = vmatprep.subr.bf16.mxu0 0
    %100 = vmatpush1.bf16.msra.mxu0 0
    %101 = vmatprep.subr.bf16.mxu0 0
    %102 = vmatpush1.bf16.msra.mxu0 0
    %103 = vmatprep.subr.bf16.mxu0 0
    %104 = vmatpush1.bf16.msra.mxu0 0
    %105 = vmatprep.subr.bf16.mxu0 0
    %106 = vmatpush1.bf16.msra.mxu0 0
    %107 = vmatprep.subr.bf16.mxu0 0
    %108 = vmatpush1.bf16.msra.mxu0 0
    %109 = vmatprep.subr.bf16.mxu0 0
    %110 = vmatpush1.bf16.msra.mxu0 0
    %111 = vmatprep.subr.bf16.mxu0 0
    %112 = vmatpush1.bf16.msra.mxu0 0
    %113 = vmatprep.subr.bf16.mxu0 0
    %114 = vmatpush1.bf16.msra.mxu0 0
    %115 = vmatprep.subr.bf16.mxu0 0
    %116 = vmatpush1.bf16.msra.mxu0 0
    %117 = vmatprep.subr.bf16.mxu0 0
    %118 = vmatpush1.bf16.msra.mxu0 0
    %119 = vmatprep.subr.bf16.mxu0 0
    %120 = vmatpush1.bf16.msra.mxu0 0
    %121 = vmatprep.subr.bf16.mxu0 0
    %122 = vmatpush1.bf16.msra.mxu0 0
    %123 = vmatprep.mubr.bf16.mxu0 0
    %124 = vmatmul.mubr.bf16.gmra.mrb[0].mxu0 %v82
    %v125 = vpop.f32.mrb[0].mxu0
    %v126 = vadd.f32 %v63, %v125
    %v127 = vpop.f32.mrb[0].mxu0
    %v128 = vadd.f32 %v67, %v127
    %v129 = vpop.f32.mrb[0].mxu0
    %v130 = vadd.f32 %v63, %v129
    %v131 = vpop.f32.mrb[0].mxu0
    %v132 = vadd.f32 %v67, %v131
    %133 = vdwg.mxu0
    %v134 = vmax.f32 %v126, 0.0
    %v135 = vmax.f32 %v128, 0.0
    %v136 = vmax.f32 %v130, 0.0
    %v137 = vmax.f32 %v132, 0.0
    %v138 = vand.u32 2147483647, %v126
    %v139 = vand.u32 2147483647, %v128
    %v140 = vand.u32 2147483647, %v130
    %v141 = vand.u32 2147483647, %v132
    %v142 = vsub.f32 0.0, %v138
    %v143 = vsub.f32 0.0, %v139
    %v144 = vsub.f32 0.0, %v140
    %v145 = vsub.f32 0.0, %v141
    %v146 = vmul.f32 %v142, 1.442695
    %v147 = vpow.pop %v146
    %v148 = vmul.f32 %v143, 1.442695
    %v149 = vpow.pop %v148
    %v150 = vmul.f32 %v144, 1.442695
    %v151 = vpow.pop %v150
    %v152 = vmul.f32 %v145, 1.442695
    %v153 = vpow.pop %v152
    %v154 = vadd.f32 %v147, 1.0
    %v155 = vlog2.pop %v154
    %v156 = vmul.f32 %v155, 0.6931472
    %v157 = vmul.f32 -0.5, %v147
    %v158 = vadd.f32 %v157, 1.0
    %v159 = vmul.f32 %v158, %v147
    %v160 = vand.u32 2147483647, %v147
    %vm161 = vcmp.lt.f32.partialorder %v160, 0.0004427343
    %v162 = vsel %vm161, %v159, %v156
    %v163 = vadd.f32 %v149, 1.0
    %v164 = vlog2.pop %v163
    %v165 = vmul.f32 %v164, 0.6931472
    %v166 = vmul.f32 -0.5, %v149
    %v167 = vadd.f32 %v166, 1.0
    %v168 = vmul.f32 %v167, %v149
    %v169 = vand.u32 2147483647, %v149
    %vm170 = vcmp.lt.f32.partialorder %v169, 0.0004427343
    %v171 = vsel %vm170, %v168, %v165
    %v172 = vadd.f32 %v151, 1.0
    %v173 = vlog2.pop %v172
    %v174 = vmul.f32 %v173, 0.6931472
    %v175 = vmul.f32 -0.5, %v151
    %v176 = vadd.f32 %v175, 1.0
    %v177 = vmul.f32 %v176, %v151
    %v178 = vand.u32 2147483647, %v151
    %vm179 = vcmp.lt.f32.partialorder %v178, 0.0004427343
    %v180 = vsel %vm179, %v177, %v174
    %v181 = vadd.f32 %v153, 1.0
    %v182 = vlog2.pop %v181
    %v183 = vmul.f32 %v182, 0.6931472
    %v184 = vmul.f32 -0.5, %v153
    %v185 = vadd.f32 %v184, 1.0
    %v186 = vmul.f32 %v185, %v153
    %v187 = vand.u32 2147483647, %v153
    %vm188 = vcmp.lt.f32.partialorder %v187, 0.0004427343
    %v189 = vsel %vm188, %v186, %v183
    %v190 = vadd.f32 %v134, %v162
    %v191 = vadd.f32 %v135, %v171
    %v192 = vadd.f32 %v136, %v180
    %v193 = vadd.f32 %v137, %v189
    %v194 = vpack.c.bf16 %v192, %v190
    %v195 = vpack.c.bf16 %v193, %v191
    %v196 = vld [vmem:[#allocation2] sm:$0xff]
    %v197 = vld [vmem:[#allocation2 + $0x8] sm:$0xff]
    %v198 = vld [vmem:[#allocation2 + $0x10] sm:$0xf]
    %v199 = vld [vmem:[#allocation2 + $0x14] sm:$0xff]
    %v200 = vld [vmem:[#allocation2 + $0x1c] sm:$0xff]
    %v201 = vld [vmem:[#allocation2 + $0x24] sm:$0xf]
    %v202 = vld [vmem:[#allocation2 + $0x28] sm:$0xff]
    %v203 = vld [vmem:[#allocation2 + $0x30] sm:$0xff]
    %v204 = vld [vmem:[#allocation2 + $0x38] sm:$0xf]
    %v205 = vld [vmem:[#allocation2 + $0x3c] sm:$0xff]
    %v206 = vld [vmem:[#allocation2 + $0x44] sm:$0xff]
    %v207 = vld [vmem:[#allocation2 + $0x4c] sm:$0xf]
    %v208 = vld [vmem:[#allocation2 + $0x50] sm:$0xff]
    %v209 = vld [vmem:[#allocation2 + $0x58] sm:$0xff]
    %v210 = vld [vmem:[#allocation2 + $0x60] sm:$0xf]
    %v211 = vld [vmem:[#allocation2 + $0x64] sm:$0xff]
    %v212 = vld [vmem:[#allocation2 + $0x6c] sm:$0xff]
    %v213 = vld [vmem:[#allocation2 + $0x74] sm:$0xf]
    %v214 = vld [vmem:[#allocation2 + $0x78] sm:$0xff]
    %v215 = vld [vmem:[#allocation2 + $0x80] sm:$0xff]
    %v216 = vld [vmem:[#allocation2 + $0x88] sm:$0xf]
    %v217 = vld [vmem:[#allocation2 + $0x8c] sm:$0xff]
    %v218 = vld [vmem:[#allocation2 + $0x94] sm:$0xff]
    %v219 = vld [vmem:[#allocation2 + $0x9c] sm:$0xf]
    %v220 = vld [vmem:[#allocation2 + $0xa0] sm:$0xff]
    %v221 = vld [vmem:[#allocation2 + $0xa8] sm:$0xff]
    %v222 = vld [vmem:[#allocation2 + $0xb0] sm:$0xf]
    %v223 = vld [vmem:[#allocation2 + $0xb4] sm:$0xff]
    %v224 = vld [vmem:[#allocation2 + $0xbc] sm:$0xff]
    %v225 = vld [vmem:[#allocation2 + $0xc4] sm:$0xf]
    %v226 = vld [vmem:[#allocation2 + $0xc8] sm:$0xff]
    %v227 = vld [vmem:[#allocation2 + $0xd0] sm:$0xff]
    %v228 = vld [vmem:[#allocation2 + $0xd8] sm:$0xf]
    %v229 = vld [vmem:[#allocation2 + $0xdc] sm:$0xff]
    %v230 = vld [vmem:[#allocation2 + $0xe4] sm:$0xff]
    %v231 = vld [vmem:[#allocation2 + $0xec] sm:$0xf]
    %v232 = vld [vmem:[#allocation2 + $0xf0] sm:$0xff]
    %v233 = vld [vmem:[#allocation2 + $0xf8] sm:$0xff]
    %v234 = vld [vmem:[#allocation2 + $0x100] sm:$0xf]
    %v235 = vld [vmem:[#allocation2 + $0x104] sm:$0xff]
    %v236 = vld [vmem:[#allocation2 + $0x10c] sm:$0xff]
    %v237 = vld [vmem:[#allocation2 + $0x114] sm:$0xf]
    %v238 = vld [vmem:[#allocation2 + $0x118] sm:$0xff]
    %v239 = vld [vmem:[#allocation2 + $0x120] sm:$0xff]
    %v240 = vld [vmem:[#allocation2 + $0x128] sm:$0xf]
    %v241 = vld [vmem:[#allocation2 + $0x12c] sm:$0xff]
    %v242 = vld [vmem:[#allocation2 + $0x134] sm:$0xff]
    %v243 = vld [vmem:[#allocation2 + $0x13c] sm:$0xf]
    %v244 = vld [vmem:[#allocation2 + $0x140] sm:$0xff]
    %v245 = vld [vmem:[#allocation2 + $0x148] sm:$0xff]
    %v246 = vld [vmem:[#allocation2 + $0x150] sm:$0xf]
    %v247 = vld [vmem:[#allocation2 + $0x154] sm:$0xff]
    %v248 = vld [vmem:[#allocation2 + $0x15c] sm:$0xff]
    %v249 = vld [vmem:[#allocation2 + $0x164] sm:$0xf]
    %v250 = vld [vmem:[#allocation2 + $0x168] sm:$0xff]
    %v251 = vld [vmem:[#allocation2 + $0x170] sm:$0xff]
    %v252 = vld [vmem:[#allocation2 + $0x178] sm:$0xf]
    %v253 = vld [vmem:[#allocation2 + $0x17c] sm:$0xff]
    %v254 = vld [vmem:[#allocation2 + $0x184] sm:$0xff]
    %v255 = vld [vmem:[#allocation2 + $0x18c] sm:$0xf]
    %v256 = vld [vmem:[#allocation2 + $0x190] sm:$0xff]
    %v257 = vld [vmem:[#allocation2 + $0x198] sm:$0xff]
    %v258 = vld [vmem:[#allocation2 + $0x1a0] sm:$0xf]
    %v259 = vld [vmem:[#allocation2 + $0x1a4] sm:$0xff]
    %v260 = vld [vmem:[#allocation2 + $0x1ac] sm:$0xff]
    %v261 = vld [vmem:[#allocation2 + $0x1b4] sm:$0xf]
    %v262 = vld [vmem:[#allocation2 + $0x1b8] sm:$0xff]
    %v263 = vld [vmem:[#allocation2 + $0x1c0] sm:$0xff]
    %v264 = vld [vmem:[#allocation2 + $0x1c8] sm:$0xf]
    %v265 = vld [vmem:[#allocation2 + $0x1cc] sm:$0xff]
    %v266 = vld [vmem:[#allocation2 + $0x1d4] sm:$0xff]
    %v267 = vld [vmem:[#allocation2 + $0x1dc] sm:$0xf]
    %v268 = vld [vmem:[#allocation2 + $0x1e0] sm:$0xff]
    %v269 = vld [vmem:[#allocation2 + $0x1e8] sm:$0xff]
    %v270 = vld [vmem:[#allocation2 + $0x1f0] sm:$0xf]
    %v271 = vld [vmem:[#allocation2 + $0x1f4] sm:$0xff]
    %v272 = vld [vmem:[#allocation2 + $0x1fc] sm:$0xff]
    %v273 = vld [vmem:[#allocation2 + $0x204] sm:$0xf]
    %v274 = vld [vmem:[#allocation2 + $0x208] sm:$0xff]
    %v275 = vld [vmem:[#allocation2 + $0x210] sm:$0xff]
    %v276 = vld [vmem:[#allocation2 + $0x218] sm:$0xf]
    %v277 = vld [vmem:[#allocation2 + $0x21c] sm:$0xff]
    %v278 = vld [vmem:[#allocation2 + $0x224] sm:$0xff]
    %v279 = vld [vmem:[#allocation2 + $0x22c] sm:$0xf]
    %v280 = vld [vmem:[#allocation2 + $0x230] sm:$0xff]
    %v281 = vld [vmem:[#allocation2 + $0x238] sm:$0xff]
    %v282 = vld [vmem:[#allocation2 + $0x240] sm:$0xf]
    %v283 = vld [vmem:[#allocation2 + $0x244] sm:$0xff]
    %v284 = vld [vmem:[#allocation2 + $0x24c] sm:$0xff]
    %v285 = vld [vmem:[#allocation2 + $0x254] sm:$0xf]
    %v286 = vld [vmem:[#allocation2 + $0x258] sm:$0xff]
    %v287 = vld [vmem:[#allocation2 + $0x260] sm:$0xff]
    %v288 = vld [vmem:[#allocation2 + $0x268] sm:$0xf]
    %v289 = vld [vmem:[#allocation2 + $0x26c] sm:$0xff]
    %v290 = vld [vmem:[#allocation2 + $0x274] sm:$0xff]
    %v291 = vld [vmem:[#allocation2 + $0x27c] sm:$0xf]
    %v292 = vld [vmem:[%s4] sm:$0x1f]
    %v294 = vlaneseq
    %v295 = vshrl.u32 %v294, 7
    %v296 = vsub.s32 0, %v295
    %v297 = vrot.slane %v292, %v296
    %v298 = vlaneseq
    %v299 = vshrl.u32 %v298, 7
    %v300 = vsub.s32 1, %v299
    %v301 = vrot.slane %v292, %v300
    %v302 = vlaneseq
    %v303 = vshrl.u32 %v302, 7
    %v304 = vsub.s32 2, %v303
    %v305 = vrot.slane %v292, %v304
    %v306 = vlaneseq
    %v307 = vshrl.u32 %v306, 7
    %v308 = vsub.s32 3, %v307
    %v309 = vrot.slane %v292, %v308
    %v310 = vlaneseq
    %v311 = vshrl.u32 %v310, 7
    %v312 = vsub.s32 4, %v311
    %v313 = vrot.slane %v292, %v312
    %v415 = vunpack.c.l.b16 %v196
    %v416 = vunpack.c.h.b16 %v196
    %v417 = vunpack.c.l.b16 %v197
    %v418 = vunpack.c.h.b16 %v197
    %v419 = vunpack.c.l.b16 %v198
    %v420 = vunpack.c.l.b16 %v199
    %v421 = vunpack.c.h.b16 %v199
    %v422 = vunpack.c.l.b16 %v200
    %v423 = vunpack.c.h.b16 %v200
    %v424 = vunpack.c.l.b16 %v201
    %v425 = vunpack.c.l.b16 %v202
    %v426 = vunpack.c.h.b16 %v202
    %v427 = vunpack.c.l.b16 %v203
    %v428 = vunpack.c.h.b16 %v203
    %v429 = vunpack.c.l.b16 %v204
    %v430 = vunpack.c.l.b16 %v205
    %v431 = vunpack.c.h.b16 %v205
    %v432 = vunpack.c.l.b16 %v206
    %v433 = vunpack.c.h.b16 %v206
    %v434 = vunpack.c.l.b16 %v207
    %v435 = vunpack.c.l.b16 %v208
    %v436 = vunpack.c.h.b16 %v208
    %v437 = vunpack.c.l.b16 %v209
    %v438 = vunpack.c.h.b16 %v209
    %v439 = vunpack.c.l.b16 %v210
    %v440 = vunpack.c.l.b16 %v211
    %v441 = vunpack.c.h.b16 %v211
    %v442 = vunpack.c.l.b16 %v212
    %v443 = vunpack.c.h.b16 %v212
    %v444 = vunpack.c.l.b16 %v213
    %v445 = vunpack.c.l.b16 %v214
    %v446 = vunpack.c.h.b16 %v214
    %v447 = vunpack.c.l.b16 %v215
    %v448 = vunpack.c.h.b16 %v215
    %v449 = vunpack.c.l.b16 %v216
    %v450 = vunpack.c.l.b16 %v217
    %v451 = vunpack.c.h.b16 %v217
    %v452 = vunpack.c.l.b16 %v218
    %v453 = vunpack.c.h.b16 %v218
    %v454 = vunpack.c.l.b16 %v219
    %v455 = vunpack.c.l.b16 %v220
    %v456 = vunpack.c.h.b16 %v220
    %v457 = vunpack.c.l.b16 %v221
    %v458 = vunpack.c.h.b16 %v221
    %v459 = vunpack.c.l.b16 %v222
    %v460 = vunpack.c.l.b16 %v223
    %v461 = vunpack.c.h.b16 %v223
    %v462 = vunpack.c.l.b16 %v224
    %v463 = vunpack.c.h.b16 %v224
    %v464 = vunpack.c.l.b16 %v225
    %v465 = vunpack.c.l.b16 %v226
    %v466 = vunpack.c.h.b16 %v226
    %v467 = vunpack.c.l.b16 %v227
    %v468 = vunpack.c.h.b16 %v227
    %v469 = vunpack.c.l.b16 %v228
    %v470 = vunpack.c.l.b16 %v229
    %v471 = vunpack.c.h.b16 %v229
    %v472 = vunpack.c.l.b16 %v230
    %v473 = vunpack.c.h.b16 %v230
    %v474 = vunpack.c.l.b16 %v231
    %v475 = vunpack.c.l.b16 %v232
    %v476 = vunpack.c.h.b16 %v232
    %v477 = vunpack.c.l.b16 %v233
    %v478 = vunpack.c.h.b16 %v233
    %v479 = vunpack.c.l.b16 %v234
    %v480 = vunpack.c.l.b16 %v235
    %v481 = vunpack.c.h.b16 %v235
    %v482 = vunpack.c.l.b16 %v236
    %v483 = vunpack.c.h.b16 %v236
    %v484 = vunpack.c.l.b16 %v237
    %v485 = vunpack.c.l.b16 %v238
    %v486 = vunpack.c.h.b16 %v238
    %v487 = vunpack.c.l.b16 %v239
    %v488 = vunpack.c.h.b16 %v239
    %v489 = vunpack.c.l.b16 %v240
    %v490 = vunpack.c.l.b16 %v241
    %v491 = vunpack.c.h.b16 %v241
    %v492 = vunpack.c.l.b16 %v242
    %v493 = vunpack.c.h.b16 %v242
    %v494 = vunpack.c.l.b16 %v243
    %v495 = vunpack.c.l.b16 %v244
    %v496 = vunpack.c.h.b16 %v244
    %v497 = vunpack.c.l.b16 %v245
    %v498 = vunpack.c.h.b16 %v245
    %v499 = vunpack.c.l.b16 %v246
    %v500 = vunpack.c.l.b16 %v247
    %v501 = vunpack.c.h.b16 %v247
    %v502 = vunpack.c.l.b16 %v248
    %v503 = vunpack.c.h.b16 %v248
    %v504 = vunpack.c.l.b16 %v249
    %v505 = vunpack.c.l.b16 %v250
    %v506 = vunpack.c.h.b16 %v250
    %v507 = vunpack.c.l.b16 %v251
    %v508 = vunpack.c.h.b16 %v251
    %v509 = vunpack.c.l.b16 %v252
    %v510 = vunpack.c.l.b16 %v253
    %v511 = vunpack.c.h.b16 %v253
    %v512 = vunpack.c.l.b16 %v254
    %v513 = vunpack.c.h.b16 %v254
    %v514 = vunpack.c.l.b16 %v255
    %v515 = vunpack.c.l.b16 %v256
    %v516 = vunpack.c.h.b16 %v256
    %v517 = vunpack.c.l.b16 %v257
    %v518 = vunpack.c.h.b16 %v257
    %v519 = vunpack.c.l.b16 %v258
    %v520 = vunpack.c.l.b16 %v259
    %v521 = vunpack.c.h.b16 %v259
    %v522 = vunpack.c.l.b16 %v260
    %v523 = vunpack.c.h.b16 %v260
    %v524 = vunpack.c.l.b16 %v261
    %v525 = vunpack.c.l.b16 %v262
    %v526 = vunpack.c.h.b16 %v262
    %v527 = vunpack.c.l.b16 %v263
    %v528 = vunpack.c.h.b16 %v263
    %v529 = vunpack.c.l.b16 %v264
    %v530 = vunpack.c.l.b16 %v265
    %v531 = vunpack.c.h.b16 %v265
    %v532 = vunpack.c.l.b16 %v266
    %v533 = vunpack.c.h.b16 %v266
    %v534 = vunpack.c.l.b16 %v267
    %v535 = vunpack.c.l.b16 %v268
    %v536 = vunpack.c.h.b16 %v268
    %v537 = vunpack.c.l.b16 %v269
    %v538 = vunpack.c.h.b16 %v269
    %v539 = vunpack.c.l.b16 %v270
    %v540 = vunpack.c.l.b16 %v271
    %v541 = vunpack.c.h.b16 %v271
    %v542 = vunpack.c.l.b16 %v272
    %v543 = vunpack.c.h.b16 %v272
    %v544 = vunpack.c.l.b16 %v273
    %v545 = vunpack.c.l.b16 %v274
    %v546 = vunpack.c.h.b16 %v274
    %v547 = vunpack.c.l.b16 %v275
    %v548 = vunpack.c.h.b16 %v275
    %v549 = vunpack.c.l.b16 %v276
    %v550 = vunpack.c.l.b16 %v277
    %v551 = vunpack.c.h.b16 %v277
    %v552 = vunpack.c.l.b16 %v278
    %v553 = vunpack.c.h.b16 %v278
    %v554 = vunpack.c.l.b16 %v279
    %v555 = vunpack.c.l.b16 %v280
    %v556 = vunpack.c.h.b16 %v280
    %v557 = vunpack.c.l.b16 %v281
    %v558 = vunpack.c.h.b16 %v281
    %v559 = vunpack.c.l.b16 %v282
    %v560 = vunpack.c.l.b16 %v283
    %v561 = vunpack.c.h.b16 %v283
    %v562 = vunpack.c.l.b16 %v284
    %v563 = vunpack.c.h.b16 %v284
    %v564 = vunpack.c.l.b16 %v285
    %v565 = vunpack.c.l.b16 %v286
    %v566 = vunpack.c.h.b16 %v286
    %v567 = vunpack.c.l.b16 %v287
    %v568 = vunpack.c.h.b16 %v287
    %v569 = vunpack.c.l.b16 %v288
    %v570 = vunpack.c.l.b16 %v289
    %v571 = vunpack.c.h.b16 %v289
    %v572 = vunpack.c.l.b16 %v290
    %v573 = vunpack.c.h.b16 %v290
    %v574 = vunpack.c.l.b16 %v291
    %v575 = vpack.c.b16 %v420, %v415
    %v576 = vpack.c.b16 %v421, %v416
    %v577 = vpack.c.b16 %v422, %v417
    %v578 = vpack.c.b16 %v423, %v418
    %v579 = vpack.c.b16 %v424, %v419
    %v580 = vpack.c.b16 %v430, %v425
    %v581 = vpack.c.b16 %v431, %v426
    %v582 = vpack.c.b16 %v432, %v427
    %v583 = vpack.c.b16 %v433, %v428
    %v584 = vpack.c.b16 %v434, %v429
    %v585 = vpack.c.b16 %v440, %v435
    %v586 = vpack.c.b16 %v441, %v436
    %v587 = vpack.c.b16 %v442, %v437
    %v588 = vpack.c.b16 %v443, %v438
    %v589 = vpack.c.b16 %v444, %v439
    %v590 = vpack.c.b16 %v450, %v445
    %v591 = vpack.c.b16 %v451, %v446
    %v592 = vpack.c.b16 %v452, %v447
    %v593 = vpack.c.b16 %v453, %v448
    %v594 = vpack.c.b16 %v454, %v449
    %v595 = vpack.c.b16 %v460, %v455
    %v596 = vpack.c.b16 %v461, %v456
    %v597 = vpack.c.b16 %v462, %v457
    %v598 = vpack.c.b16 %v463, %v458
    %v599 = vpack.c.b16 %v464, %v459
    %v600 = vpack.c.b16 %v470, %v465
    %v601 = vpack.c.b16 %v471, %v466
    %v602 = vpack.c.b16 %v472, %v467
    %v603 = vpack.c.b16 %v473, %v468
    %v604 = vpack.c.b16 %v474, %v469
    %v605 = vpack.c.b16 %v480, %v475
    %v606 = vpack.c.b16 %v481, %v476
    %v607 = vpack.c.b16 %v482, %v477
    %v608 = vpack.c.b16 %v483, %v478
    %v609 = vpack.c.b16 %v484, %v479
    %v610 = vpack.c.b16 %v490, %v485
    %v611 = vpack.c.b16 %v491, %v486
    %v612 = vpack.c.b16 %v492, %v487
    %v613 = vpack.c.b16 %v493, %v488
    %v614 = vpack.c.b16 %v494, %v489
    %v615 = vpack.c.b16 %v500, %v495
    %v616 = vpack.c.b16 %v501, %v496
    %v617 = vpack.c.b16 %v502, %v497
    %v618 = vpack.c.b16 %v503, %v498
    %v619 = vpack.c.b16 %v504, %v499
    %v620 = vpack.c.b16 %v510, %v505
    %v621 = vpack.c.b16 %v511, %v506
    %v622 = vpack.c.b16 %v512, %v507
    %v623 = vpack.c.b16 %v513, %v508
    %v624 = vpack.c.b16 %v514, %v509
    %v625 = vpack.c.b16 %v520, %v515
    %v626 = vpack.c.b16 %v521, %v516
    %v627 = vpack.c.b16 %v522, %v517
    %v628 = vpack.c.b16 %v523, %v518
    %v629 = vpack.c.b16 %v524, %v519
    %v630 = vpack.c.b16 %v530, %v525
    %v631 = vpack.c.b16 %v531, %v526
    %v632 = vpack.c.b16 %v532, %v527
    %v633 = vpack.c.b16 %v533, %v528
    %v634 = vpack.c.b16 %v534, %v529
    %v635 = vpack.c.b16 %v540, %v535
    %v636 = vpack.c.b16 %v541, %v536
    %v637 = vpack.c.b16 %v542, %v537
    %v638 = vpack.c.b16 %v543, %v538
    %v639 = vpack.c.b16 %v544, %v539
    %v640 = vpack.c.b16 %v550, %v545
    %v641 = vpack.c.b16 %v551, %v546
    %v642 = vpack.c.b16 %v552, %v547
    %v643 = vpack.c.b16 %v553, %v548
    %v644 = vpack.c.b16 %v554, %v549
    %v645 = vpack.c.b16 %v560, %v555
    %v646 = vpack.c.b16 %v561, %v556
    %v647 = vpack.c.b16 %v562, %v557
    %v648 = vpack.c.b16 %v563, %v558
    %v649 = vpack.c.b16 %v564, %v559
    %v650 = vpack.c.b16 %v570, %v565
    %v651 = vpack.c.b16 %v571, %v566
    %v652 = vpack.c.b16 %v572, %v567
    %v653 = vpack.c.b16 %v573, %v568
    %v654 = vpack.c.b16 %v574, %v569
    %735 = vmatprep.subr.bf16.mxu0 %v576
    %736 = vmatpush1.bf16.msra.mxu0 %v575
    %737 = vmatprep.subr.bf16.mxu0 %v581
    %738 = vmatpush1.bf16.msra.mxu0 %v580
    %739 = vmatprep.subr.bf16.mxu0 %v586
    %740 = vmatpush1.bf16.msra.mxu0 %v585
    %741 = vmatprep.subr.bf16.mxu0 %v591
    %742 = vmatpush1.bf16.msra.mxu0 %v590
    %743 = vmatprep.subr.bf16.mxu0 %v596
    %744 = vmatpush1.bf16.msra.mxu0 %v595
    %745 = vmatprep.subr.bf16.mxu0 %v601
    %746 = vmatpush1.bf16.msra.mxu0 %v600
    %747 = vmatprep.subr.bf16.mxu0 %v606
    %748 = vmatpush1.bf16.msra.mxu0 %v605
    %749 = vmatprep.subr.bf16.mxu0 %v611
    %750 = vmatpush1.bf16.msra.mxu0 %v610
    %751 = vmatprep.subr.bf16.mxu0 %v616
    %752 = vmatpush1.bf16.msra.mxu0 %v615
    %753 = vmatprep.subr.bf16.mxu0 %v621
    %754 = vmatpush1.bf16.msra.mxu0 %v620
    %755 = vmatprep.subr.bf16.mxu0 %v626
    %756 = vmatpush1.bf16.msra.mxu0 %v625
    %757 = vmatprep.subr.bf16.mxu0 %v631
    %758 = vmatpush1.bf16.msra.mxu0 %v630
    %759 = vmatprep.subr.bf16.mxu0 %v636
    %760 = vmatpush1.bf16.msra.mxu0 %v635
    %761 = vmatprep.subr.bf16.mxu0 %v641
    %762 = vmatpush1.bf16.msra.mxu0 %v640
    %763 = vmatprep.subr.bf16.mxu0 %v646
    %764 = vmatpush1.bf16.msra.mxu0 %v645
    %765 = vmatprep.subr.bf16.mxu0 %v651
    %766 = vmatpush1.bf16.msra.mxu0 %v650
    %767 = vmatprep.mubr.bf16.mxu0 %v195
    %768 = vmatmul.mubr.bf16.gmra.mrb[0].mxu0 %v194
    %v769 = vpop.f32.mrb[0].mxu0
    %v770 = vadd.f32 %v297, %v769
    %v771 = vpop.f32.mrb[0].mxu0
    %v772 = vadd.f32 %v301, %v771
    %v773 = vpop.f32.mrb[0].mxu0
    %v774 = vadd.f32 %v297, %v773
    %v775 = vpop.f32.mrb[0].mxu0
    %v776 = vadd.f32 %v301, %v775
    %777 = vdwg.mxu0
    %778 = vmatprep.subr.bf16.mxu0 %v578
    %779 = vmatpush1.bf16.msra.mxu0 %v577
    %780 = vmatprep.subr.bf16.mxu0 %v583
    %781 = vmatpush1.bf16.msra.mxu0 %v582
    %782 = vmatprep.subr.bf16.mxu0 %v588
    %783 = vmatpush1.bf16.msra.mxu0 %v587
    %784 = vmatprep.subr.bf16.mxu0 %v593
    %785 = vmatpush1.bf16.msra.mxu0 %v592
    %786 = vmatprep.subr.bf16.mxu0 %v598
    %787 = vmatpush1.bf16.msra.mxu0 %v597
    %788 = vmatprep.subr.bf16.mxu0 %v603
    %789 = vmatpush1.bf16.msra.mxu0 %v602
    %790 = vmatprep.subr.bf16.mxu0 %v608
    %791 = vmatpush1.bf16.msra.mxu0 %v607
    %792 = vmatprep.subr.bf16.mxu0 %v613
    %793 = vmatpush1.bf16.msra.mxu0 %v612
    %794 = vmatprep.subr.bf16.mxu0 %v618
    %795 = vmatpush1.bf16.msra.mxu0 %v617
    %796 = vmatprep.subr.bf16.mxu0 %v623
    %797 = vmatpush1.bf16.msra.mxu0 %v622
    %798 = vmatprep.subr.bf16.mxu0 %v628
    %799 = vmatpush1.bf16.msra.mxu0 %v627
    %800 = vmatprep.subr.bf16.mxu0 %v633
    %801 = vmatpush1.bf16.msra.mxu0 %v632
    %802 = vmatprep.subr.bf16.mxu0 %v638
    %803 = vmatpush1.bf16.msra.mxu0 %v637
    %804 = vmatprep.subr.bf16.mxu0 %v643
    %805 = vmatpush1.bf16.msra.mxu0 %v642
    %806 = vmatprep.subr.bf16.mxu0 %v648
    %807 = vmatpush1.bf16.msra.mxu0 %v647
    %808 = vmatprep.subr.bf16.mxu0 %v653
    %809 = vmatpush1.bf16.msra.mxu0 %v652
    %810 = vmatprep.mubr.bf16.mxu0 %v195
    %811 = vmatmul.mubr.bf16.gmra.mrb[0].mxu0 %v194
    %v812 = vpop.f32.mrb[0].mxu0
    %v813 = vadd.f32 %v305, %v812
    %v814 = vpop.f32.mrb[0].mxu0
    %v815 = vadd.f32 %v309, %v814
    %v816 = vpop.f32.mrb[0].mxu0
    %v817 = vadd.f32 %v305, %v816
    %v818 = vpop.f32.mrb[0].mxu0
    %v819 = vadd.f32 %v309, %v818
    %820 = vdwg.mxu0
    %821 = vmatprep.subr.bf16.mxu0 0
    %822 = vmatpush1.bf16.msra.mxu0 %v579
    %823 = vmatprep.subr.bf16.mxu0 0
    %824 = vmatpush1.bf16.msra.mxu0 %v584
    %825 = vmatprep.subr.bf16.mxu0 0
    %826 = vmatpush1.bf16.msra.mxu0 %v589
    %827 = vmatprep.subr.bf16.mxu0 0
    %828 = vmatpush1.bf16.msra.mxu0 %v594
    %829 = vmatprep.subr.bf16.mxu0 0
    %830 = vmatpush1.bf16.msra.mxu0 %v599
    %831 = vmatprep.subr.bf16.mxu0 0
    %832 = vmatpush1.bf16.msra.mxu0 %v604
    %833 = vmatprep.subr.bf16.mxu0 0
    %834 = vmatpush1.bf16.msra.mxu0 %v609
    %835 = vmatprep.subr.bf16.mxu0 0
    %836 = vmatpush1.bf16.msra.mxu0 %v614
    %837 = vmatprep.subr.bf16.mxu0 0
    %838 = vmatpush1.bf16.msra.mxu0 %v619
    %839 = vmatprep.subr.bf16.mxu0 0
    %840 = vmatpush1.bf16.msra.mxu0 %v624
    %841 = vmatprep.subr.bf16.mxu0 0
    %842 = vmatpush1.bf16.msra.mxu0 %v629
    %843 = vmatprep.subr.bf16.mxu0 0
    %844 = vmatpush1.bf16.msra.mxu0 %v634
    %845 = vmatprep.subr.bf16.mxu0 0
    %846 = vmatpush1.bf16.msra.mxu0 %v639
    %847 = vmatprep.subr.bf16.mxu0 0
    %848 = vmatpush1.bf16.msra.mxu0 %v644
    %849 = vmatprep.subr.bf16.mxu0 0
    %850 = vmatpush1.bf16.msra.mxu0 %v649
    %851 = vmatprep.subr.bf16.mxu0 0
    %852 = vmatpush1.bf16.msra.mxu0 %v654
    %853 = vmatprep.mubr.bf16.mxu0 %v195
    %854 = vmatmul.mubr.bf16.gmra.mrb[0].mxu0 %v194
    %v855 = vpop.f32.mrb[0].mxu0
    %v856 = vadd.f32 %v313, %v855
    %v857 = vpop.f32.mrb[0].mxu0
    %v858 = vpop.f32.mrb[0].mxu0
    %v859 = vadd.f32 %v313, %v858
    %v860 = vpop.f32.mrb[0].mxu0
    %861 = vdwg.mxu0
    %v862 = vmax.f32 %v770, 0.0
    %v863 = vmax.f32 %v772, 0.0
    %v864 = vmax.f32 %v813, 0.0
    %v865 = vmax.f32 %v815, 0.0
    %v866 = vmax.f32 %v856, 0.0
    %v867 = vmax.f32 %v774, 0.0
    %v868 = vmax.f32 %v776, 0.0
    %v869 = vmax.f32 %v817, 0.0
    %v870 = vmax.f32 %v819, 0.0
    %v871 = vmax.f32 %v859, 0.0
    %v872 = vand.u32 2147483647, %v770
    %v873 = vand.u32 2147483647, %v772
    %v874 = vand.u32 2147483647, %v813
    %v875 = vand.u32 2147483647, %v815
    %v876 = vand.u32 2147483647, %v856
    %v877 = vand.u32 2147483647, %v774
    %v878 = vand.u32 2147483647, %v776
    %v879 = vand.u32 2147483647, %v817
    %v880 = vand.u32 2147483647, %v819
    %v881 = vand.u32 2147483647, %v859
    %v882 = vsub.f32 0.0, %v872
    %v883 = vsub.f32 0.0, %v873
    %v884 = vsub.f32 0.0, %v874
    %v885 = vsub.f32 0.0, %v875
    %v886 = vsub.f32 0.0, %v876
    %v887 = vsub.f32 0.0, %v877
    %v888 = vsub.f32 0.0, %v878
    %v889 = vsub.f32 0.0, %v879
    %v890 = vsub.f32 0.0, %v880
    %v891 = vsub.f32 0.0, %v881
    %v892 = vmul.f32 %v882, 1.442695
    %v893 = vpow.pop %v892
    %v894 = vmul.f32 %v883, 1.442695
    %v895 = vpow.pop %v894
    %v896 = vmul.f32 %v884, 1.442695
    %v897 = vpow.pop %v896
    %v898 = vmul.f32 %v885, 1.442695
    %v899 = vpow.pop %v898
    %v900 = vmul.f32 %v886, 1.442695
    %v901 = vpow.pop %v900
    %v902 = vmul.f32 %v887, 1.442695
    %v903 = vpow.pop %v902
    %v904 = vmul.f32 %v888, 1.442695
    %v905 = vpow.pop %v904
    %v906 = vmul.f32 %v889, 1.442695
    %v907 = vpow.pop %v906
    %v908 = vmul.f32 %v890, 1.442695
    %v909 = vpow.pop %v908
    %v910 = vmul.f32 %v891, 1.442695
    %v911 = vpow.pop %v910
    %v912 = vadd.f32 %v893, 1.0
    %v913 = vlog2.pop %v912
    %v914 = vmul.f32 %v913, 0.6931472
    %v915 = vmul.f32 -0.5, %v893
    %v916 = vadd.f32 %v915, 1.0
    %v917 = vmul.f32 %v916, %v893
    %v918 = vand.u32 2147483647, %v893
    %vm919 = vcmp.lt.f32.partialorder %v918, 0.0004427343
    %v920 = vsel %vm919, %v917, %v914
    %v921 = vadd.f32 %v895, 1.0
    %v922 = vlog2.pop %v921
    %v923 = vmul.f32 %v922, 0.6931472
    %v924 = vmul.f32 -0.5, %v895
    %v925 = vadd.f32 %v924, 1.0
    %v926 = vmul.f32 %v925, %v895
    %v927 = vand.u32 2147483647, %v895
    %vm928 = vcmp.lt.f32.partialorder %v927, 0.0004427343
    %v929 = vsel %vm928, %v926, %v923
    %v930 = vadd.f32 %v897, 1.0
    %v931 = vlog2.pop %v930
    %v932 = vmul.f32 %v931, 0.6931472
    %v933 = vmul.f32 -0.5, %v897
    %v934 = vadd.f32 %v933, 1.0
    %v935 = vmul.f32 %v934, %v897
    %v936 = vand.u32 2147483647, %v897
    %vm937 = vcmp.lt.f32.partialorder %v936, 0.0004427343
    %v938 = vsel %vm937, %v935, %v932
    %v939 = vadd.f32 %v899, 1.0
    %v940 = vlog2.pop %v939
    %v941 = vmul.f32 %v940, 0.6931472
    %v942 = vmul.f32 -0.5, %v899
    %v943 = vadd.f32 %v942, 1.0
    %v944 = vmul.f32 %v943, %v899
    %v945 = vand.u32 2147483647, %v899
    %vm946 = vcmp.lt.f32.partialorder %v945, 0.0004427343
    %v947 = vsel %vm946, %v944, %v941
    %v948 = vadd.f32 %v901, 1.0
    %v949 = vlog2.pop %v948
    %v950 = vmul.f32 %v949, 0.6931472
    %v951 = vmul.f32 -0.5, %v901
    %v952 = vadd.f32 %v951, 1.0
    %v953 = vmul.f32 %v952, %v901
    %v954 = vand.u32 2147483647, %v901
    %vm955 = vcmp.lt.f32.partialorder %v954, 0.0004427343
    %v956 = vsel %vm955, %v953, %v950
    %v957 = vadd.f32 %v903, 1.0
    %v958 = vlog2.pop %v957
    %v959 = vmul.f32 %v958, 0.6931472
    %v960 = vmul.f32 -0.5, %v903
    %v961 = vadd.f32 %v960, 1.0
    %v962 = vmul.f32 %v961, %v903
    %v963 = vand.u32 2147483647, %v903
    %vm964 = vcmp.lt.f32.partialorder %v963, 0.0004427343
    %v965 = vsel %vm964, %v962, %v959
    %v966 = vadd.f32 %v905, 1.0
    %v967 = vlog2.pop %v966
    %v968 = vmul.f32 %v967, 0.6931472
    %v969 = vmul.f32 -0.5, %v905
    %v970 = vadd.f32 %v969, 1.0
    %v971 = vmul.f32 %v970, %v905
    %v972 = vand.u32 2147483647, %v905
    %vm973 = vcmp.lt.f32.partialorder %v972, 0.0004427343
    %v974 = vsel %vm973, %v971, %v968
    %v975 = vadd.f32 %v907, 1.0
    %v976 = vlog2.pop %v975
    %v977 = vmul.f32 %v976, 0.6931472
    %v978 = vmul.f32 -0.5, %v907
    %v979 = vadd.f32 %v978, 1.0
    %v980 = vmul.f32 %v979, %v907
    %v981 = vand.u32 2147483647, %v907
    %vm982 = vcmp.lt.f32.partialorder %v981, 0.0004427343
    %v983 = vsel %vm982, %v980, %v977
    %v984 = vadd.f32 %v909, 1.0
    %v985 = vlog2.pop %v984
    %v986 = vmul.f32 %v985, 0.6931472
    %v987 = vmul.f32 -0.5, %v909
    %v988 = vadd.f32 %v987, 1.0
    %v989 = vmul.f32 %v988, %v909
    %v990 = vand.u32 2147483647, %v909
    %vm991 = vcmp.lt.f32.partialorder %v990, 0.0004427343
    %v992 = vsel %vm991, %v989, %v986
    %v993 = vadd.f32 %v911, 1.0
    %v994 = vlog2.pop %v993
    %v995 = vmul.f32 %v994, 0.6931472
    %v996 = vmul.f32 -0.5, %v911
    %v997 = vadd.f32 %v996, 1.0
    %v998 = vmul.f32 %v997, %v911
    %v999 = vand.u32 2147483647, %v911
    %vm1000 = vcmp.lt.f32.partialorder %v999, 0.0004427343
    %v1001 = vsel %vm1000, %v998, %v995
    %v1002 = vadd.f32 %v862, %v920
    %v1003 = vadd.f32 %v863, %v929
    %v1004 = vadd.f32 %v864, %v938
    %v1005 = vadd.f32 %v865, %v947
    %v1006 = vadd.f32 %v866, %v956
    %v1007 = vadd.f32 %v867, %v965
    %v1008 = vadd.f32 %v868, %v974
    %v1009 = vadd.f32 %v869, %v983
    %v1010 = vadd.f32 %v870, %v992
    %v1011 = vadd.f32 %v871, %v1001
    %v1012 = vpack.c.bf16 %v1007, %v1002
    %v1013 = vpack.c.bf16 %v1008, %v1003
    %v1014 = vpack.c.bf16 %v1009, %v1004
    %v1015 = vpack.c.bf16 %v1010, %v1005
    %v1016 = vpack.c.bf16 %v1011, %v1006
    %v1017 = vld [vmem:[#allocation4] sm:$0xff]
    %v1018 = vld [vmem:[#allocation4 + $0x8] sm:$0xff]
    %v1019 = vld [vmem:[#allocation4 + $0x10] sm:$0xff]
    %v1020 = vld [vmem:[#allocation4 + $0x18] sm:$0xff]
    %v1021 = vld [vmem:[#allocation4 + $0x20] sm:$0xff]
    %v1022 = vld [vmem:[#allocation4 + $0x28] sm:$0xff]
    %v1023 = vld [vmem:[#allocation4 + $0x30] sm:$0xff]
    %v1024 = vld [vmem:[#allocation4 + $0x38] sm:$0xff]
    %v1025 = vld [vmem:[#allocation4 + $0x40] sm:$0xff]
    %v1026 = vld [vmem:[#allocation4 + $0x48] sm:$0xff]
    %v1027 = vld [vmem:[#allocation4 + $0x50] sm:$0xff]
    %v1028 = vld [vmem:[#allocation4 + $0x58] sm:$0xff]
    %v1029 = vld [vmem:[#allocation4 + $0x60] sm:$0xff]
    %v1030 = vld [vmem:[#allocation4 + $0x68] sm:$0xff]
    %v1031 = vld [vmem:[#allocation4 + $0x70] sm:$0xff]
    %v1032 = vld [vmem:[#allocation4 + $0x78] sm:$0xff]
    %v1033 = vld [vmem:[#allocation4 + $0x80] sm:$0xff]
    %v1034 = vld [vmem:[#allocation4 + $0x88] sm:$0xff]
    %v1035 = vld [vmem:[#allocation4 + $0x90] sm:$0xff]
    %v1036 = vld [vmem:[#allocation4 + $0x98] sm:$0xff]
    %v1037 = vld [vmem:[#allocation4 + $0xa0] sm:$0xff]
    %v1038 = vld [vmem:[#allocation4 + $0xa8] sm:$0xff]
    %v1039 = vld [vmem:[#allocation4 + $0xb0] sm:$0xff]
    %v1040 = vld [vmem:[#allocation4 + $0xb8] sm:$0xff]
    %v1041 = vld [vmem:[#allocation4 + $0xc0] sm:$0xff]
    %v1042 = vld [vmem:[#allocation4 + $0xc8] sm:$0xff]
    %v1043 = vld [vmem:[#allocation4 + $0xd0] sm:$0xff]
    %v1044 = vld [vmem:[#allocation4 + $0xd8] sm:$0xff]
    %v1045 = vld [vmem:[#allocation4 + $0xe0] sm:$0xff]
    %v1046 = vld [vmem:[#allocation4 + $0xe8] sm:$0xff]
    %v1047 = vld [vmem:[#allocation4 + $0xf0] sm:$0xff]
    %v1048 = vld [vmem:[#allocation4 + $0xf8] sm:$0xff]
    %v1049 = vld [vmem:[#allocation4 + $0x100] sm:$0xff]
    %v1050 = vld [vmem:[#allocation4 + $0x108] sm:$0xff]
    %v1051 = vld [vmem:[#allocation4 + $0x110] sm:$0xff]
    %v1052 = vld [vmem:[#allocation4 + $0x118] sm:$0xff]
    %v1053 = vld [vmem:[#allocation4 + $0x120] sm:$0xff]
    %v1054 = vld [vmem:[#allocation4 + $0x128] sm:$0xff]
    %v1055 = vld [vmem:[#allocation4 + $0x130] sm:$0xff]
    %v1056 = vld [vmem:[#allocation4 + $0x138] sm:$0xff]
    %v1057 = vld [vmem:[#allocation4 + $0x140] sm:$0xff]
    %v1058 = vld [vmem:[#allocation4 + $0x148] sm:$0xff]
    %v1059 = vld [vmem:[#allocation4 + $0x150] sm:$0xff]
    %v1060 = vld [vmem:[#allocation4 + $0x158] sm:$0xff]
    %v1061 = vld [vmem:[#allocation4 + $0x160] sm:$0xff]
    %v1062 = vld [vmem:[#allocation4 + $0x168] sm:$0xff]
    %v1063 = vld [vmem:[#allocation4 + $0x170] sm:$0xff]
    %v1064 = vld [vmem:[#allocation4 + $0x178] sm:$0xff]
    %v1065 = vld [vmem:[#allocation4 + $0x180] sm:$0xff]
    %v1066 = vld [vmem:[#allocation4 + $0x188] sm:$0xff]
    %v1067 = vld [vmem:[#allocation4 + $0x190] sm:$0xff]
    %v1068 = vld [vmem:[#allocation4 + $0x198] sm:$0xff]
    %v1069 = vld [vmem:[#allocation4 + $0x1a0] sm:$0xff]
    %v1070 = vld [vmem:[#allocation4 + $0x1a8] sm:$0xff]
    %v1071 = vld [vmem:[#allocation4 + $0x1b0] sm:$0xff]
    %v1072 = vld [vmem:[#allocation4 + $0x1b8] sm:$0xff]
    %v1073 = vld [vmem:[#allocation4 + $0x1c0] sm:$0xff]
    %v1074 = vld [vmem:[#allocation4 + $0x1c8] sm:$0xff]
    %v1075 = vld [vmem:[#allocation4 + $0x1d0] sm:$0xff]
    %v1076 = vld [vmem:[#allocation4 + $0x1d8] sm:$0xff]
    %v1077 = vld [vmem:[#allocation4 + $0x1e0] sm:$0xff]
    %v1078 = vld [vmem:[#allocation4 + $0x1e8] sm:$0xff]
    %v1079 = vld [vmem:[#allocation4 + $0x1f0] sm:$0xff]
    %v1080 = vld [vmem:[#allocation4 + $0x1f8] sm:$0xff]
    %v1081 = vld [vmem:[#allocation4 + $0x200] sm:$0xff]
    %v1082 = vld [vmem:[#allocation4 + $0x208] sm:$0xff]
    %v1083 = vld [vmem:[#allocation4 + $0x210] sm:$0xff]
    %v1084 = vld [vmem:[#allocation4 + $0x218] sm:$0xff]
    %v1085 = vld [vmem:[#allocation4 + $0x220] sm:$0xff]
    %v1086 = vld [vmem:[#allocation4 + $0x228] sm:$0xff]
    %v1087 = vld [vmem:[#allocation4 + $0x230] sm:$0xff]
    %v1088 = vld [vmem:[#allocation4 + $0x238] sm:$0xff]
    %v1089 = vld [vmem:[#allocation4 + $0x240] sm:$0xff]
    %v1090 = vld [vmem:[#allocation4 + $0x248] sm:$0xff]
    %v1091 = vld [vmem:[#allocation4 + $0x250] sm:$0xff]
    %v1092 = vld [vmem:[#allocation4 + $0x258] sm:$0xff]
    %v1093 = vld [vmem:[#allocation4 + $0x260] sm:$0xff]
    %v1094 = vld [vmem:[#allocation4 + $0x268] sm:$0xff]
    %v1095 = vld [vmem:[#allocation4 + $0x270] sm:$0xff]
    %v1096 = vld [vmem:[#allocation4 + $0x278] sm:$0xff]
    %v1097 = vld [vmem:[%s6] sm:$0x3]
    %v1099 = vlaneseq
    %v1100 = vshrl.u32 %v1099, 7
    %v1101 = vsub.s32 0, %v1100
    %v1102 = vrot.slane %v1097, %v1101
    %v1103 = vlaneseq
    %v1104 = vshrl.u32 %v1103, 7
    %v1105 = vsub.s32 1, %v1104
    %v1106 = vrot.slane %v1097, %v1105
    %v1189 = vunpack.c.l.b16 %v1017
    %v1190 = vunpack.c.h.b16 %v1017
    %v1191 = vunpack.c.l.b16 %v1018
    %v1192 = vunpack.c.h.b16 %v1018
    %v1193 = vunpack.c.l.b16 %v1019
    %v1194 = vunpack.c.h.b16 %v1019
    %v1195 = vunpack.c.l.b16 %v1020
    %v1196 = vunpack.c.h.b16 %v1020
    %v1197 = vunpack.c.l.b16 %v1021
    %v1198 = vunpack.c.h.b16 %v1021
    %v1199 = vunpack.c.l.b16 %v1022
    %v1200 = vunpack.c.h.b16 %v1022
    %v1201 = vunpack.c.l.b16 %v1023
    %v1202 = vunpack.c.h.b16 %v1023
    %v1203 = vunpack.c.l.b16 %v1024
    %v1204 = vunpack.c.h.b16 %v1024
    %v1205 = vunpack.c.l.b16 %v1025
    %v1206 = vunpack.c.h.b16 %v1025
    %v1207 = vunpack.c.l.b16 %v1026
    %v1208 = vunpack.c.h.b16 %v1026
    %v1209 = vunpack.c.l.b16 %v1027
    %v1210 = vunpack.c.h.b16 %v1027
    %v1211 = vunpack.c.l.b16 %v1028
    %v1212 = vunpack.c.h.b16 %v1028
    %v1213 = vunpack.c.l.b16 %v1029
    %v1214 = vunpack.c.h.b16 %v1029
    %v1215 = vunpack.c.l.b16 %v1030
    %v1216 = vunpack.c.h.b16 %v1030
    %v1217 = vunpack.c.l.b16 %v1031
    %v1218 = vunpack.c.h.b16 %v1031
    %v1219 = vunpack.c.l.b16 %v1032
    %v1220 = vunpack.c.h.b16 %v1032
    %v1221 = vunpack.c.l.b16 %v1033
    %v1222 = vunpack.c.h.b16 %v1033
    %v1223 = vunpack.c.l.b16 %v1034
    %v1224 = vunpack.c.h.b16 %v1034
    %v1225 = vunpack.c.l.b16 %v1035
    %v1226 = vunpack.c.h.b16 %v1035
    %v1227 = vunpack.c.l.b16 %v1036
    %v1228 = vunpack.c.h.b16 %v1036
    %v1229 = vunpack.c.l.b16 %v1037
    %v1230 = vunpack.c.h.b16 %v1037
    %v1231 = vunpack.c.l.b16 %v1038
    %v1232 = vunpack.c.h.b16 %v1038
    %v1233 = vunpack.c.l.b16 %v1039
    %v1234 = vunpack.c.h.b16 %v1039
    %v1235 = vunpack.c.l.b16 %v1040
    %v1236 = vunpack.c.h.b16 %v1040
    %v1237 = vunpack.c.l.b16 %v1041
    %v1238 = vunpack.c.h.b16 %v1041
    %v1239 = vunpack.c.l.b16 %v1042
    %v1240 = vunpack.c.h.b16 %v1042
    %v1241 = vunpack.c.l.b16 %v1043
    %v1242 = vunpack.c.h.b16 %v1043
    %v1243 = vunpack.c.l.b16 %v1044
    %v1244 = vunpack.c.h.b16 %v1044
    %v1245 = vunpack.c.l.b16 %v1045
    %v1246 = vunpack.c.h.b16 %v1045
    %v1247 = vunpack.c.l.b16 %v1046
    %v1248 = vunpack.c.h.b16 %v1046
    %v1249 = vunpack.c.l.b16 %v1047
    %v1250 = vunpack.c.h.b16 %v1047
    %v1251 = vunpack.c.l.b16 %v1048
    %v1252 = vunpack.c.h.b16 %v1048
    %v1253 = vunpack.c.l.b16 %v1049
    %v1254 = vunpack.c.h.b16 %v1049
    %v1255 = vunpack.c.l.b16 %v1050
    %v1256 = vunpack.c.h.b16 %v1050
    %v1257 = vunpack.c.l.b16 %v1051
    %v1258 = vunpack.c.h.b16 %v1051
    %v1259 = vunpack.c.l.b16 %v1052
    %v1260 = vunpack.c.h.b16 %v1052
    %v1261 = vunpack.c.l.b16 %v1053
    %v1262 = vunpack.c.h.b16 %v1053
    %v1263 = vunpack.c.l.b16 %v1054
    %v1264 = vunpack.c.h.b16 %v1054
    %v1265 = vunpack.c.l.b16 %v1055
    %v1266 = vunpack.c.h.b16 %v1055
    %v1267 = vunpack.c.l.b16 %v1056
    %v1268 = vunpack.c.h.b16 %v1056
    %v1269 = vunpack.c.l.b16 %v1057
    %v1270 = vunpack.c.h.b16 %v1057
    %v1271 = vunpack.c.l.b16 %v1058
    %v1272 = vunpack.c.h.b16 %v1058
    %v1273 = vunpack.c.l.b16 %v1059
    %v1274 = vunpack.c.h.b16 %v1059
    %v1275 = vunpack.c.l.b16 %v1060
    %v1276 = vunpack.c.h.b16 %v1060
    %v1277 = vunpack.c.l.b16 %v1061
    %v1278 = vunpack.c.h.b16 %v1061
    %v1279 = vunpack.c.l.b16 %v1062
    %v1280 = vunpack.c.h.b16 %v1062
    %v1281 = vunpack.c.l.b16 %v1063
    %v1282 = vunpack.c.h.b16 %v1063
    %v1283 = vunpack.c.l.b16 %v1064
    %v1284 = vunpack.c.h.b16 %v1064
    %v1285 = vunpack.c.l.b16 %v1065
    %v1286 = vunpack.c.h.b16 %v1065
    %v1287 = vunpack.c.l.b16 %v1066
    %v1288 = vunpack.c.h.b16 %v1066
    %v1289 = vunpack.c.l.b16 %v1067
    %v1290 = vunpack.c.h.b16 %v1067
    %v1291 = vunpack.c.l.b16 %v1068
    %v1292 = vunpack.c.h.b16 %v1068
    %v1293 = vunpack.c.l.b16 %v1069
    %v1294 = vunpack.c.h.b16 %v1069
    %v1295 = vunpack.c.l.b16 %v1070
    %v1296 = vunpack.c.h.b16 %v1070
    %v1297 = vunpack.c.l.b16 %v1071
    %v1298 = vunpack.c.h.b16 %v1071
    %v1299 = vunpack.c.l.b16 %v1072
    %v1300 = vunpack.c.h.b16 %v1072
    %v1301 = vunpack.c.l.b16 %v1073
    %v1302 = vunpack.c.h.b16 %v1073
    %v1303 = vunpack.c.l.b16 %v1074
    %v1304 = vunpack.c.h.b16 %v1074
    %v1305 = vunpack.c.l.b16 %v1075
    %v1306 = vunpack.c.h.b16 %v1075
    %v1307 = vunpack.c.l.b16 %v1076
    %v1308 = vunpack.c.h.b16 %v1076
    %v1309 = vunpack.c.l.b16 %v1077
    %v1310 = vunpack.c.h.b16 %v1077
    %v1311 = vunpack.c.l.b16 %v1078
    %v1312 = vunpack.c.h.b16 %v1078
    %v1313 = vunpack.c.l.b16 %v1079
    %v1314 = vunpack.c.h.b16 %v1079
    %v1315 = vunpack.c.l.b16 %v1080
    %v1316 = vunpack.c.h.b16 %v1080
    %v1317 = vunpack.c.l.b16 %v1081
    %v1318 = vunpack.c.h.b16 %v1081
    %v1319 = vunpack.c.l.b16 %v1082
    %v1320 = vunpack.c.h.b16 %v1082
    %v1321 = vunpack.c.l.b16 %v1083
    %v1322 = vunpack.c.h.b16 %v1083
    %v1323 = vunpack.c.l.b16 %v1084
    %v1324 = vunpack.c.h.b16 %v1084
    %v1325 = vunpack.c.l.b16 %v1085
    %v1326 = vunpack.c.h.b16 %v1085
    %v1327 = vunpack.c.l.b16 %v1086
    %v1328 = vunpack.c.h.b16 %v1086
    %v1329 = vunpack.c.l.b16 %v1087
    %v1330 = vunpack.c.h.b16 %v1087
    %v1331 = vunpack.c.l.b16 %v1088
    %v1332 = vunpack.c.h.b16 %v1088
    %v1333 = vunpack.c.l.b16 %v1089
    %v1334 = vunpack.c.h.b16 %v1089
    %v1335 = vunpack.c.l.b16 %v1090
    %v1336 = vunpack.c.h.b16 %v1090
    %v1337 = vunpack.c.l.b16 %v1091
    %v1338 = vunpack.c.h.b16 %v1091
    %v1339 = vunpack.c.l.b16 %v1092
    %v1340 = vunpack.c.h.b16 %v1092
    %v1341 = vunpack.c.l.b16 %v1093
    %v1342 = vunpack.c.h.b16 %v1093
    %v1343 = vunpack.c.l.b16 %v1094
    %v1344 = vunpack.c.h.b16 %v1094
    %v1345 = vunpack.c.l.b16 %v1095
    %v1346 = vunpack.c.h.b16 %v1095
    %v1347 = vunpack.c.l.b16 %v1096
    %v1348 = vunpack.c.h.b16 %v1096
    %v1349 = vpack.c.b16 %v1191, %v1189
    %v1350 = vpack.c.b16 %v1192, %v1190
    %v1351 = vpack.c.b16 %v1195, %v1193
    %v1352 = vpack.c.b16 %v1196, %v1194
    %v1353 = vpack.c.b16 %v1199, %v1197
    %v1354 = vpack.c.b16 %v1200, %v1198
    %v1355 = vpack.c.b16 %v1203, %v1201
    %v1356 = vpack.c.b16 %v1204, %v1202
    %v1357 = vpack.c.b16 %v1207, %v1205
    %v1358 = vpack.c.b16 %v1208, %v1206
    %v1359 = vpack.c.b16 %v1211, %v1209
    %v1360 = vpack.c.b16 %v1212, %v1210
    %v1361 = vpack.c.b16 %v1215, %v1213
    %v1362 = vpack.c.b16 %v1216, %v1214
    %v1363 = vpack.c.b16 %v1219, %v1217
    %v1364 = vpack.c.b16 %v1220, %v1218
    %v1365 = vpack.c.b16 %v1223, %v1221
    %v1366 = vpack.c.b16 %v1224, %v1222
    %v1367 = vpack.c.b16 %v1227, %v1225
    %v1368 = vpack.c.b16 %v1228, %v1226
    %v1369 = vpack.c.b16 %v1231, %v1229
    %v1370 = vpack.c.b16 %v1232, %v1230
    %v1371 = vpack.c.b16 %v1235, %v1233
    %v1372 = vpack.c.b16 %v1236, %v1234
    %v1373 = vpack.c.b16 %v1239, %v1237
    %v1374 = vpack.c.b16 %v1240, %v1238
    %v1375 = vpack.c.b16 %v1243, %v1241
    %v1376 = vpack.c.b16 %v1244, %v1242
    %v1377 = vpack.c.b16 %v1247, %v1245
    %v1378 = vpack.c.b16 %v1248, %v1246
    %v1379 = vpack.c.b16 %v1251, %v1249
    %v1380 = vpack.c.b16 %v1252, %v1250
    %v1381 = vpack.c.b16 %v1255, %v1253
    %v1382 = vpack.c.b16 %v1256, %v1254
    %v1383 = vpack.c.b16 %v1259, %v1257
    %v1384 = vpack.c.b16 %v1260, %v1258
    %v1385 = vpack.c.b16 %v1263, %v1261
    %v1386 = vpack.c.b16 %v1264, %v1262
    %v1387 = vpack.c.b16 %v1267, %v1265
    %v1388 = vpack.c.b16 %v1268, %v1266
    %v1389 = vpack.c.b16 %v1271, %v1269
    %v1390 = vpack.c.b16 %v1272, %v1270
    %v1391 = vpack.c.b16 %v1275, %v1273
    %v1392 = vpack.c.b16 %v1276, %v1274
    %v1393 = vpack.c.b16 %v1279, %v1277
    %v1394 = vpack.c.b16 %v1280, %v1278
    %v1395 = vpack.c.b16 %v1283, %v1281
    %v1396 = vpack.c.b16 %v1284, %v1282
    %v1397 = vpack.c.b16 %v1287, %v1285
    %v1398 = vpack.c.b16 %v1288, %v1286
    %v1399 = vpack.c.b16 %v1291, %v1289
    %v1400 = vpack.c.b16 %v1292, %v1290
    %v1401 = vpack.c.b16 %v1295, %v1293
    %v1402 = vpack.c.b16 %v1296, %v1294
    %v1403 = vpack.c.b16 %v1299, %v1297
    %v1404 = vpack.c.b16 %v1300, %v1298
    %v1405 = vpack.c.b16 %v1303, %v1301
    %v1406 = vpack.c.b16 %v1304, %v1302
    %v1407 = vpack.c.b16 %v1307, %v1305
    %v1408 = vpack.c.b16 %v1308, %v1306
    %v1409 = vpack.c.b16 %v1311, %v1309
    %v1410 = vpack.c.b16 %v1312, %v1310
    %v1411 = vpack.c.b16 %v1315, %v1313
    %v1412 = vpack.c.b16 %v1316, %v1314
    %v1413 = vpack.c.b16 %v1319, %v1317
    %v1414 = vpack.c.b16 %v1320, %v1318
    %v1415 = vpack.c.b16 %v1323, %v1321
    %v1416 = vpack.c.b16 %v1324, %v1322
    %v1417 = vpack.c.b16 %v1327, %v1325
    %v1418 = vpack.c.b16 %v1328, %v1326
    %v1419 = vpack.c.b16 %v1331, %v1329
    %v1420 = vpack.c.b16 %v1332, %v1330
    %v1421 = vpack.c.b16 %v1335, %v1333
    %v1422 = vpack.c.b16 %v1336, %v1334
    %v1423 = vpack.c.b16 %v1339, %v1337
    %v1424 = vpack.c.b16 %v1340, %v1338
    %v1425 = vpack.c.b16 %v1343, %v1341
    %v1426 = vpack.c.b16 %v1344, %v1342
    %v1427 = vpack.c.b16 %v1347, %v1345
    %v1428 = vpack.c.b16 %v1348, %v1346
    %1509 = vmatprep.subr.bf16.mxu0 %v1350
    %1510 = vmatpush1.bf16.msra.mxu0 %v1349
    %1511 = vmatprep.subr.bf16.mxu0 %v1352
    %1512 = vmatpush1.bf16.msra.mxu0 %v1351
    %1513 = vmatprep.subr.bf16.mxu0 %v1354
    %1514 = vmatpush1.bf16.msra.mxu0 %v1353
    %1515 = vmatprep.subr.bf16.mxu0 %v1356
    %1516 = vmatpush1.bf16.msra.mxu0 %v1355
    %1517 = vmatprep.subr.bf16.mxu0 %v1358
    %1518 = vmatpush1.bf16.msra.mxu0 %v1357
    %1519 = vmatprep.subr.bf16.mxu0 %v1360
    %1520 = vmatpush1.bf16.msra.mxu0 %v1359
    %1521 = vmatprep.subr.bf16.mxu0 %v1362
    %1522 = vmatpush1.bf16.msra.mxu0 %v1361
    %1523 = vmatprep.subr.bf16.mxu0 %v1364
    %1524 = vmatpush1.bf16.msra.mxu0 %v1363
    %1525 = vmatprep.subr.bf16.mxu0 %v1366
    %1526 = vmatpush1.bf16.msra.mxu0 %v1365
    %1527 = vmatprep.subr.bf16.mxu0 %v1368
    %1528 = vmatpush1.bf16.msra.mxu0 %v1367
    %1529 = vmatprep.subr.bf16.mxu0 %v1370
    %1530 = vmatpush1.bf16.msra.mxu0 %v1369
    %1531 = vmatprep.subr.bf16.mxu0 %v1372
    %1532 = vmatpush1.bf16.msra.mxu0 %v1371
    %1533 = vmatprep.subr.bf16.mxu0 %v1374
    %1534 = vmatpush1.bf16.msra.mxu0 %v1373
    %1535 = vmatprep.subr.bf16.mxu0 %v1376
    %1536 = vmatpush1.bf16.msra.mxu0 %v1375
    %1537 = vmatprep.subr.bf16.mxu0 %v1378
    %1538 = vmatpush1.bf16.msra.mxu0 %v1377
    %1539 = vmatprep.subr.bf16.mxu0 %v1380
    %1540 = vmatpush1.bf16.msra.mxu0 %v1379
    %1541 = vmatprep.mubr.bf16.mxu0 %v1013
    %1542 = vmatmul.mubr.bf16.gmra.mrb[0].mxu0 %v1012
    %v1543 = vpop.f32.mrb[0].mxu0
    %v1544 = vadd.f32 %v1102, %v1543
    %v1545 = vpop.f32.mrb[0].mxu0
    %v1546 = vadd.f32 %v1106, %v1545
    %v1547 = vpop.f32.mrb[0].mxu0
    %v1548 = vadd.f32 %v1102, %v1547
    %v1549 = vpop.f32.mrb[0].mxu0
    %v1550 = vadd.f32 %v1106, %v1549
    %1551 = vdwg.mxu0
    %1552 = vmatprep.subr.bf16.mxu0 %v1382
    %1553 = vmatpush1.bf16.msra.mxu0 %v1381
    %1554 = vmatprep.subr.bf16.mxu0 %v1384
    %1555 = vmatpush1.bf16.msra.mxu0 %v1383
    %1556 = vmatprep.subr.bf16.mxu0 %v1386
    %1557 = vmatpush1.bf16.msra.mxu0 %v1385
    %1558 = vmatprep.subr.bf16.mxu0 %v1388
    %1559 = vmatpush1.bf16.msra.mxu0 %v1387
    %1560 = vmatprep.subr.bf16.mxu0 %v1390
    %1561 = vmatpush1.bf16.msra.mxu0 %v1389
    %1562 = vmatprep.subr.bf16.mxu0 %v1392
    %1563 = vmatpush1.bf16.msra.mxu0 %v1391
    %1564 = vmatprep.subr.bf16.mxu0 %v1394
    %1565 = vmatpush1.bf16.msra.mxu0 %v1393
    %1566 = vmatprep.subr.bf16.mxu0 %v1396
    %1567 = vmatpush1.bf16.msra.mxu0 %v1395
    %1568 = vmatprep.subr.bf16.mxu0 %v1398
    %1569 = vmatpush1.bf16.msra.mxu0 %v1397
    %1570 = vmatprep.subr.bf16.mxu0 %v1400
    %1571 = vmatpush1.bf16.msra.mxu0 %v1399
    %1572 = vmatprep.subr.bf16.mxu0 %v1402
    %1573 = vmatpush1.bf16.msra.mxu0 %v1401
    %1574 = vmatprep.subr.bf16.mxu0 %v1404
    %1575 = vmatpush1.bf16.msra.mxu0 %v1403
    %1576 = vmatprep.subr.bf16.mxu0 %v1406
    %1577 = vmatpush1.bf16.msra.mxu0 %v1405
    %1578 = vmatprep.subr.bf16.mxu0 %v1408
    %1579 = vmatpush1.bf16.msra.mxu0 %v1407
    %1580 = vmatprep.subr.bf16.mxu0 %v1410
    %1581 = vmatpush1.bf16.msra.mxu0 %v1409
    %1582 = vmatprep.subr.bf16.mxu0 %v1412
    %1583 = vmatpush1.bf16.msra.mxu0 %v1411
    %1584 = vmatprep.mubr.bf16.mxu0 %v1015
    %1585 = vmatmul.mubr.bf16.gmra.mrb[0].mxu0 %v1014
    %v1586 = vpop.f32.mrb[0].mxu0
    %v1587 = vadd.f32 %v1544, %v1586
    %v1588 = vpop.f32.mrb[0].mxu0
    %v1589 = vadd.f32 %v1546, %v1588
    %v1590 = vpop.f32.mrb[0].mxu0
    %v1591 = vadd.f32 %v1548, %v1590
    %v1592 = vpop.f32.mrb[0].mxu0
    %v1593 = vadd.f32 %v1550, %v1592
    %1594 = vdwg.mxu0
    %1595 = vmatprep.subr.bf16.mxu0 %v1414
    %1596 = vmatpush1.bf16.msra.mxu0 %v1413
    %1597 = vmatprep.subr.bf16.mxu0 %v1416
    %1598 = vmatpush1.bf16.msra.mxu0 %v1415
    %1599 = vmatprep.subr.bf16.mxu0 %v1418
    %1600 = vmatpush1.bf16.msra.mxu0 %v1417
    %1601 = vmatprep.subr.bf16.mxu0 %v1420
    %1602 = vmatpush1.bf16.msra.mxu0 %v1419
    %1603 = vmatprep.subr.bf16.mxu0 %v1422
    %1604 = vmatpush1.bf16.msra.mxu0 %v1421
    %1605 = vmatprep.subr.bf16.mxu0 %v1424
    %1606 = vmatpush1.bf16.msra.mxu0 %v1423
    %1607 = vmatprep.subr.bf16.mxu0 %v1426
    %1608 = vmatpush1.bf16.msra.mxu0 %v1425
    %1609 = vmatprep.subr.bf16.mxu0 %v1428
    %1610 = vmatpush1.bf16.msra.mxu0 %v1427
    %1611 = vmatprep.subr.bf16.mxu0 0
    %1612 = vmatpush1.bf16.msra.mxu0 0
    %1613 = vmatprep.subr.bf16.mxu0 0
    %1614 = vmatpush1.bf16.msra.mxu0 0
    %1615 = vmatprep.subr.bf16.mxu0 0
    %1616 = vmatpush1.bf16.msra.mxu0 0
    %1617 = vmatprep.subr.bf16.mxu0 0
    %1618 = vmatpush1.bf16.msra.mxu0 0
    %1619 = vmatprep.subr.bf16.mxu0 0
    %1620 = vmatpush1.bf16.msra.mxu0 0
    %1621 = vmatprep.subr.bf16.mxu0 0
    %1622 = vmatpush1.bf16.msra.mxu0 0
    %1623 = vmatprep.subr.bf16.mxu0 0
    %1624 = vmatpush1.bf16.msra.mxu0 0
    %1625 = vmatprep.subr.bf16.mxu0 0
    %1626 = vmatpush1.bf16.msra.mxu0 0
    %1627 = vmatprep.mubr.bf16.mxu0 0
    %1628 = vmatmul.mubr.bf16.gmra.mrb[0].mxu0 %v1016
    %v1629 = vpop.f32.mrb[0].mxu0
    %v1630 = vadd.f32 %v1587, %v1629
    %v1631 = vpop.f32.mrb[0].mxu0
    %v1632 = vadd.f32 %v1589, %v1631
    %v1633 = vpop.f32.mrb[0].mxu0
    %v1634 = vadd.f32 %v1591, %v1633
    %v1635 = vpop.f32.mrb[0].mxu0
    %v1636 = vadd.f32 %v1593, %v1635
    %1637 = vdwg.mxu0
    %1638 = vst [vmem:[%s7] sm:$0xff] %v1630
    %1639 = vst [vmem:[%s7 + $0x8] sm:$0xff] %v1632
    %1640 = vst [vmem:[%s7 + $0x10] sm:$0xff] %v1634
    %1641 = vst [vmem:[%s7 + $0x18] sm:$0xff] %v1636
    // Predicated region
    $region38: #{_decoder_rec_forward.1} parent=1 // pred_check
      _
    $region39: #{_decoder_rec_forward.1} parent=1 // pred_check_branch
      %1643 = sbr.rel (0) target = $region41
    $region40: #{_decoder_rec_forward.1} parent=1 // pred_region
      _
    $region41: #{_decoder_rec_forward.1} parent=1 // pred_fallthru
      _
    // Predicated region
    $region42: #{_decoder_rec_forward.1} parent=1 // pred_check
      _
    $region43: #{_decoder_rec_forward.1} parent=1 // pred_check_branch
      %1645 = sbr.rel (0) target = $region45
    $region44: #{_decoder_rec_forward.1} parent=1 // pred_region
      _
    $region45: #{_decoder_rec_forward.1} parent=1 // pred_fallthru
      _
    %1646 = vsyncpa [#allocation3], 1
    %1647 = vsyncpa [#allocation5], 1

</llo_original>
